<compile_context>
chip_gen: v5e
topology: v5e:2x2
jax: 0.10.0
libtpu: 0.0.40
codegen_flags: <defaults>
</compile_context>

<pallas_src>
import functools
import math

import jax
import jax.numpy as jnp
import numpy as np
from jax.experimental import pallas as pl
from jax.experimental.pallas import tpu as pltpu


def _pick_block_q(n, target):
    """Query-tile size: one tile for small n; multiples of 128 when n allows it."""
    if n <= target:
        return n                                    # single tile, no extra grid steps
    if n % 128 == 0 and target >= 128:
        tq = (target // 128) * 128
        while tq >= 128:                            # largest 128-multiple divisor <= target
            if n % tq == 0:
                return tq
            tq -= 128
    for tq in range(min(target, n), 7, -1):         # fallback: sublane-aligned divisor
        if n % tq == 0 and tq % 8 == 0:
            return tq
    return n


def _vmem_limit_bytes():
    """Scoped-VMEM limit with headroom, derived from the local chip when possible."""
    try:
        cap = int(pltpu.get_tpu_info().vmem_capacity_bytes)
        # leave ~1/8 of physical VMEM for compiler-internal scratch; cap at 112 MiB.
        # => ~56 MiB on v7x (64 MiB/TC), 112 MiB on v5e/v6e (128 MiB).
        return int(min(cap - cap // 8, 112 * 1024 * 1024))
    except Exception:
        return 48 * 1024 * 1024   # conservative: above every default, below every physical


def _gat_kernel(h_ref, w_all_ref, w_sc_ref, rel_ref, bias_ref, out_ref, *rest,
                n_head, f_out, block_q, matmul_dtype, approx_recip,
                emit_attn, attn_dtype):
    if emit_attn:
        attn_ref, hp_scr, src_scr, dstT_scr = rest
    else:
        hp_scr, src_scr, dstT_scr = rest

    qt = pl.program_id(1)

    # ---- once per batch: fused lane-dense projection + f32 attention scores --------
    @pl.when(qt == 0)
    def _project():
        hmat = h_ref[0]                                            # (n, f_in) f32
        # h_prime for every head in ONE lane-dense MXU matmul; single full-width store.
        hp = jnp.dot(hmat.astype(matmul_dtype), w_all_ref[...],
                     preferred_element_type=jnp.float32)           # (n, H*f_out)
        hp_scr[...] = hp.astype(matmul_dtype)
        # a_src / a_dst folded into H+H columns; kept f32 even on the bf16 fast path
        # so the softmax logits don't inherit bf16 error (tiny matmul: 2H lanes).
        sc = jnp.dot(hmat, w_sc_ref[...],
                     preferred_element_type=jnp.float32)           # (n, 2H) f32
        src_scr[...] = sc[:, :n_head]                              # (n, H) column form
        # dst scores to row form once per batch (tiny (n,H)->(H,n) XLU transpose);
        # this replaces the old h^T input + (H,f_in)@(f_in,n) matmul.
        dstT_scr[...] = jnp.transpose(sc[:, n_head:])              # (H, n)

    # ---- per query tile: logits -> leaky-relu -> relation gate -> softmax -> out ---
    rel = rel_ref[0].astype(jnp.float32)                           # (TQ, n); relation may be bf16
    q0 = pl.multiple_of(qt * block_q, block_q)
    src_tile = src_scr[pl.ds(q0, block_q), :]                      # (TQ, H) f32

    head_outs = []
    for hd in range(n_head):                                       # static head loop
        logits = src_tile[:, hd:hd + 1] + dstT_scr[hd:hd + 1, :]   # (TQ,1)+(1,n)->(TQ,n)
        logits = jnp.where(logits >= 0, logits, 0.2 * logits)      # LeakyReLU(0.2)
        logits = rel * logits                 # multiplicative gate (matches torch), NOT a -inf mask
        m = jnp.max(logits, axis=-1, keepdims=True)
        e = jnp.exp(logits - m)
        denom = jnp.sum(e, axis=-1, keepdims=True)
        attn = e * pl.reciprocal(denom, approx=approx_recip)       # (TQ, n) f32
        # TODO(synk): training-mode attn_dropout would use pltpu.prng_seed/prng_random_bits;
        # eval / p=0.0 -> identity (matches nn.Dropout.eval()).
        if emit_attn:
            attn_ref[0, hd] = attn.astype(attn_dtype)
        hp_h = hp_scr[:, hd * f_out:(hd + 1) * f_out]              # static ref slice (n, f_out)
        head_outs.append(jnp.dot(attn.astype(matmul_dtype), hp_h,
                                 preferred_element_type=jnp.float32))

    # Single lane-dense (TQ, H*f_out) store; per-head bias already tiled by wrapper.
    out_ref[0] = jnp.concatenate(head_outs, axis=-1) + bias_ref[...]


def batch_multihead_graph_attention(h, relation, w, a_src, a_dst, bias, *,
                                    block_q=256,
                                    use_bf16_matmul=False,
                                    approx_softmax_recip=True,
                                    return_attn=True,
                                    attn_dtype=jnp.float32):
    """h: (bs, n, f_in) f32; relation: (bs, n, n) in f32 or bf16 (upcast in-kernel);
    w: (n_head, f_in, f_out); a_src/a_dst: (n_head, f_out, 1); bias: (f_out,).

    Returns (out (bs, n_head, n, f_out) f32, attn (bs, n_head, n, n) attn_dtype) when
    return_attn=True, else just out.  Skipping / bf16-ing attn removes / halves the
    dominant HBM stream of this memory-bound kernel."""
    bs, n, f_in = h.shape
    n_head, _, f_out = w.shape
    assert relation.shape == (bs, n, n)

    matmul_dtype = jnp.bfloat16 if use_bf16_matmul else jnp.float32
    tq = _pick_block_q(n, block_q)
    n_qt = n // tq

    # ---- parameter-side preprocessing (tiny wrapper glue) --------------------------
    # [w_0 | ... | w_{H-1}] : one lane-dense projection matrix for all heads.
    w_all = jnp.transpose(w, (1, 0, 2)).reshape(f_in, n_head * f_out).astype(matmul_dtype)
    # Fold a_src / a_dst into score columns: col h of w_src = w_h @ a_src_h (f32 always).
    w_src = jnp.einsum('hfo,ho->fh', w, a_src[:, :, 0])            # (f_in, H)
    w_dst = jnp.einsum('hfo,ho->fh', w, a_dst[:, :, 0])            # (f_in, H)
    w_sc = jnp.concatenate([w_src, w_dst], axis=1).astype(jnp.float32)   # (f_in, 2H)
    bias_flat = jnp.tile(bias.reshape(1, f_out), (1, n_head)).astype(jnp.float32)

    kernel = functools.partial(
        _gat_kernel, n_head=n_head, f_out=f_out, block_q=tq,
        matmul_dtype=matmul_dtype, approx_recip=approx_softmax_recip,
        emit_attn=return_attn, attn_dtype=attn_dtype)

    in_specs = [
        pl.BlockSpec((1, n, f_in), lambda b, q: (b, 0, 0)),              # h (single HBM read)
        pl.BlockSpec((f_in, n_head * f_out), lambda b, q: (0, 0)),       # W (all heads, lane-dense)
        pl.BlockSpec((f_in, 2 * n_head), lambda b, q: (0, 0)),           # score columns (f32)
        pl.BlockSpec((1, tq, n), lambda b, q: (b, q, 0)),                # relation tile (f32/bf16)
        pl.BlockSpec((1, n_head * f_out), lambda b, q: (0, 0)),          # bias (tiled per head)
    ]
    out_spec_out = pl.BlockSpec((1, tq, n_head * f_out), lambda b, q: (b, q, 0))   # lane-dense out
    out_shape_out = jax.ShapeDtypeStruct((bs, n, n_head * f_out), jnp.float32)
    scratch_shapes = [
        pltpu.VMEM((n, n_head * f_out), matmul_dtype),   # h_prime (lane-dense, single store)
        pltpu.VMEM((n, n_head), jnp.float32),            # src scores, column form
        pltpu.VMEM((n_head, n), jnp.float32),            # dst scores, row form
    ]
    if return_attn:
        out_specs = [out_spec_out,
                     pl.BlockSpec((1, n_head, tq, n), lambda b, q: (b, 0, q, 0))]
        out_shape = (out_shape_out,
                     jax.ShapeDtypeStruct((bs, n_head, n, n), attn_dtype))
    else:
        out_specs = out_spec_out
        out_shape = out_shape_out

    grid_spec = pltpu.PrefetchScalarGridSpec(
        num_scalar_prefetch=0,
        grid=(bs, n_qt),
        in_specs=in_specs,
        out_specs=out_specs,
        scratch_shapes=scratch_shapes,
    )

    attn_bytes = bs * n_head * n * n * jnp.dtype(attn_dtype).itemsize if return_attn else 0
    flops = int(2 * bs * n * f_in * n_head * f_out        # fused projection (all heads)
                + 2 * bs * n * f_in * 2 * n_head          # src/dst score columns
                + 2 * bs * n_head * n * n * f_out         # attn @ h_prime
                + 7 * bs * n_head * n * n)                # logits / softmax elementwise
    bytes_accessed = int(h.size * 4
                         + relation.size * relation.dtype.itemsize
                         + w_all.size * w_all.dtype.itemsize + w_sc.size * 4 + bias_flat.size * 4
                         + bs * n * n_head * f_out * 4
                         + attn_bytes)
    cost = pl.CostEstimate(flops=flops,
                           transcendentals=int(bs * n_head * n * n),
                           bytes_accessed=bytes_accessed)

    result = pl.pallas_call(
        kernel,
        out_shape=out_shape,
        grid_spec=grid_spec,
        compiler_params=pltpu.CompilerParams(
            # batch axis parallel (megacore / v7x 2-TC sharding); query-tile axis
            # carries the per-batch VMEM scratch, so it stays "arbitrary".
            # TODO(synk): for bs=1 on v7x, a 2-way parallel core split over query
            # tiles (with a per-core projection recompute) would engage both TCs.
            dimension_semantics=("parallel", "arbitrary"),
            vmem_limit_bytes=_vmem_limit_bytes(),
        ),
        cost_estimate=cost,
    )(h, w_all, w_sc, relation, bias_flat)

    if return_attn:
        out_flat, attn = result
    else:
        out_flat, attn = result, None

    # Layout plumbing back to the module's (bs, n_head, n, f_out) output.
    out = out_flat.reshape(bs, n, n_head, f_out).transpose(0, 2, 1, 3)
    return (out, attn) if return_attn else out


def _reference(h, relation, w, a_src, a_dst, bias):
    # pure-JAX reference mirroring the PyTorch forward
    hp = jnp.einsum('bnf,hfo->bhno', h, w)                         # (bs,H,n,f_out)
    s = jnp.einsum('bhno,hoi->bhni', hp, a_src)                    # (bs,H,n,1)
    d = jnp.einsum('bhno,hoi->bhni', hp, a_dst)                    # (bs,H,n,1)
    attn = s + jnp.swapaxes(d, -1, -2)                             # (bs,H,n,n)
    attn = jnp.where(attn >= 0, attn, 0.2 * attn)
    attn = relation[:, None, :, :] * attn
    attn = jax.nn.softmax(attn, axis=-1)
    out = jnp.einsum('bhij,bhjo->bhio', attn, hp) + bias
    return out, attn


if __name__ == "__main__":
    # n_head * f_out = 128 -> lane-dense fused projection & output stores;
    # n = 64 -> single query tile per batch (per review: tq = n for small n).
    bs, n, f_in, f_out, n_head = 2, 64, 16, 32, 4
    key = jax.random.PRNGKey(0)
    k_h, k_r, k_w, k_as, k_ad = jax.random.split(key, 5)

    # deterministic xavier-uniform-style init (gain=1.414), matching the module init
    gain = 1.414
    bw = gain * math.sqrt(6.0 / (f_in + f_out))
    ba = gain * math.sqrt(6.0 / (f_out + 1))

    h = jax.random.normal(k_h, (bs, n, f_in), dtype=jnp.float32)
    relation = (jax.random.uniform(k_r, (bs, n, n)) > 0.4).astype(jnp.float32)
    w = jax.random.uniform(k_w, (n_head, f_in, f_out), minval=-bw, maxval=bw,
                           dtype=jnp.float32)
    a_src = jax.random.uniform(k_as, (n_head, f_out, 1), minval=-ba, maxval=ba,
                               dtype=jnp.float32)
    a_dst = jax.random.uniform(k_ad, (n_head, f_out, 1), minval=-ba, maxval=ba,
                               dtype=jnp.float32)
    bias = jnp.zeros((f_out,), dtype=jnp.float32)

    ref_out, ref_attn = _reference(h, relation, w, a_src, a_dst, bias)

    # --- strict f32 path (f32 MXU inputs, exact reciprocal, f32 attn) ---------------
    out, attn = batch_multihead_graph_attention(
        h, relation, w, a_src, a_dst, bias,
        use_bf16_matmul=False, approx_softmax_recip=False,
        return_attn=True, attn_dtype=jnp.float32)
    out = jax.block_until_ready(out)
    attn = jax.block_until_ready(attn)
    # tolerance covers f32 matmul reassociation (head-fused projection, folded a_src/a_dst)
    np.testing.assert_allclose(np.asarray(out), np.asarray(ref_out),
                               rtol=5e-5, atol=5e-5)
    np.testing.assert_allclose(np.asarray(attn), np.asarray(ref_attn),
                               rtol=5e-5, atol=5e-5)

    # --- fast path: bf16 MXU inputs, bf16 relation read, bf16 attn writeback --------
    out_f, attn_f = batch_multihead_graph_attention(
        h, relation.astype(jnp.bfloat16), w, a_src, a_dst, bias,
        use_bf16_matmul=True, approx_softmax_recip=True,
        return_attn=True, attn_dtype=jnp.bfloat16)
    out_f = jax.block_until_ready(out_f)
    np.testing.assert_allclose(np.asarray(out_f), np.asarray(ref_out),
                               rtol=1e-1, atol=1e-1)
    np.testing.assert_allclose(np.asarray(attn_f.astype(jnp.float32)),
                               np.asarray(ref_attn), rtol=1e-1, atol=1e-1)

    # --- attn-skip path (out-only consumers drop the dominant O(H*n^2) HBM write) ---
    out_only = batch_multihead_graph_attention(
        h, relation, w, a_src, a_dst, bias,
        use_bf16_matmul=False, approx_softmax_recip=False, return_attn=False)
    out_only = jax.block_until_ready(out_only)
    np.testing.assert_allclose(np.asarray(out_only), np.asarray(ref_out),
                               rtol=5e-5, atol=5e-5)

    print("KERNEL_OK")
</pallas_src>

<mosaic_0001>
module attributes {stable_mosaic.version = 11 : i64} {
  func.func @_gat_kernel(%arg0: i32, %arg1: i32, %arg2: memref<1x64x16xf32, #tpu.memory_space<vmem>>, %arg3: memref<16x128xf32, #tpu.memory_space<vmem>>, %arg4: memref<16x8xf32, #tpu.memory_space<vmem>>, %arg5: memref<1x64x64xf32, #tpu.memory_space<vmem>>, %arg6: memref<1x128xf32, #tpu.memory_space<vmem>>, %arg7: memref<1x64x128xf32, #tpu.memory_space<vmem>>, %arg8: memref<1x4x64x64xf32, #tpu.memory_space<vmem>>, %arg9: memref<64x128xf32, #tpu.memory_space<vmem>>, %arg10: memref<64x4xf32, #tpu.memory_space<vmem>>, %arg11: memref<4x64xf32, #tpu.memory_space<vmem>>) attributes {dimension_semantics = [#tpu.dimension_semantics<parallel>, #tpu.dimension_semantics<arbitrary>], iteration_bounds = array<i64: 2, 1>, scalar_prefetch = 0 : i64, scratch_operands = 3 : i64, tpu.core_type = #tpu.core_type<tc>, window_params = [{transform_indices = @transform_0, window_bounds = array<i64: 1, 64, 16>}, {pipeline_mode = #tpu.pipeline_mode<synchronous>, transform_indices = @transform_1, window_bounds = array<i64: 16, 128>}, {pipeline_mode = #tpu.pipeline_mode<synchronous>, transform_indices = @transform_2, window_bounds = array<i64: 16, 8>}, {transform_indices = @transform_3, window_bounds = array<i64: 1, 64, 64>}, {pipeline_mode = #tpu.pipeline_mode<synchronous>, transform_indices = @transform_4, window_bounds = array<i64: 1, 128>}, {transform_indices = @transform_5, window_bounds = array<i64: 1, 64, 128>}, {transform_indices = @transform_6, window_bounds = array<i64: 1, 4, 64, 64>}]} {
    %c0_i32 = arith.constant 0 : i32
    %0 = arith.cmpi eq, %arg1, %c0_i32 : i32
    %1 = arith.extui %0 : i1 to i32
    %c0_i32_0 = arith.constant 0 : i32
    %2 = arith.cmpi ne, %1, %c0_i32_0 : i32
    scf.if %2 {
      %c0_54 = arith.constant 0 : index
      %c0_55 = arith.constant 0 : index
      %c0_56 = arith.constant 0 : index
      %120 = vector.load %arg2[%c0_54, %c0_55, %c0_56] : memref<1x64x16xf32, #tpu.memory_space<vmem>>, vector<1x64x16xf32>
      %121 = vector.shape_cast %120 : vector<1x64x16xf32> to vector<64x16xf32>
      %c0_57 = arith.constant 0 : index
      %c0_58 = arith.constant 0 : index
      %122 = vector.load %arg3[%c0_57, %c0_58] : memref<16x128xf32, #tpu.memory_space<vmem>>, vector<16x128xf32>
      %cst_59 = arith.constant dense<0.000000e+00> : vector<64x128xf32>
      %123 = tpu.matmul %121, %122, %cst_59 {dimension_numbers = #tpu.dot_dimension_numbers<[1], [0], [0], [1], [0, 0, 1, 1], [], []>} : vector<64x16xf32>, vector<16x128xf32>, vector<64x128xf32> -> vector<64x128xf32>
      %c0_60 = arith.constant 0 : index
      %c0_61 = arith.constant 0 : index
      %124 = vector.load %arg9[%c0_60, %c0_61] : memref<64x128xf32, #tpu.memory_space<vmem>>, vector<64x128xf32>
      tpu.vector_store %arg9[%c0_60, %c0_61], %123 {strides = array<i32>} : memref<64x128xf32, #tpu.memory_space<vmem>>, vector<64x128xf32>,
      %c0_62 = arith.constant 0 : index
      %c0_63 = arith.constant 0 : index
      %125 = vector.load %arg4[%c0_62, %c0_63] : memref<16x8xf32, #tpu.memory_space<vmem>>, vector<16x8xf32>
      %cst_64 = arith.constant dense<0.000000e+00> : vector<64x8xf32>
      %126 = tpu.matmul %121, %125, %cst_64 {dimension_numbers = #tpu.dot_dimension_numbers<[1], [0], [0], [1], [0, 0, 1, 1], [], []>} : vector<64x16xf32>, vector<16x8xf32>, vector<64x8xf32> -> vector<64x8xf32>
      %127 = vector.extract_strided_slice %126 {offsets = [0, 0], sizes = [64, 4], strides = [1, 1]} : vector<64x8xf32> to vector<64x4xf32>
      %c0_65 = arith.constant 0 : index
      %c0_66 = arith.constant 0 : index
      %128 = vector.load %arg10[%c0_65, %c0_66] : memref<64x4xf32, #tpu.memory_space<vmem>>, vector<64x4xf32>
      tpu.vector_store %arg10[%c0_65, %c0_66], %127 {strides = array<i32>} : memref<64x4xf32, #tpu.memory_space<vmem>>, vector<64x4xf32>,
      %129 = vector.extract_strided_slice %126 {offsets = [0, 4], sizes = [64, 4], strides = [1, 1]} : vector<64x8xf32> to vector<64x4xf32>
      %130 = tpu.transpose %129, [1, 0] : vector<64x4xf32> -> vector<4x64xf32>
      %c0_67 = arith.constant 0 : index
      %c0_68 = arith.constant 0 : index
      %131 = vector.load %arg11[%c0_67, %c0_68] : memref<4x64xf32, #tpu.memory_space<vmem>>, vector<4x64xf32>
      tpu.vector_store %arg11[%c0_67, %c0_68], %130 {strides = array<i32>} : memref<4x64xf32, #tpu.memory_space<vmem>>, vector<4x64xf32>,
    } else {
    }
    %c0 = arith.constant 0 : index
    %c0_1 = arith.constant 0 : index
    %c0_2 = arith.constant 0 : index
    %3 = vector.load %arg5[%c0, %c0_1, %c0_2] : memref<1x64x64xf32, #tpu.memory_space<vmem>>, vector<1x64x64xf32>
    %4 = vector.shape_cast %3 : vector<1x64x64xf32> to vector<64x64xf32>
    %c64_i32 = arith.constant 64 : i32
    %5 = arith.muli %arg1, %c64_i32 : i32
    %6 = tpu.assume_multiple %5, 64 : i32
    %7 = arith.index_cast %6 : i32 to index
    %c0_3 = arith.constant 0 : index
    %8 = vector.load %arg10[%7, %c0_3] : memref<64x4xf32, #tpu.memory_space<vmem>>, vector<64x4xf32>
    %9 = vector.extract_strided_slice %8 {offsets = [0, 0], sizes = [64, 1], strides = [1, 1]} : vector<64x4xf32> to vector<64x1xf32>
    %c0_4 = arith.constant 0 : index
    %c0_5 = arith.constant 0 : index
    %10 = vector.load %arg11[%c0_4, %c0_5] : memref<4x64xf32, #tpu.memory_space<vmem>>, vector<1x64xf32>
    %11 = vector.broadcast %9 : vector<64x1xf32> to vector<64x64xf32>
    %12 = vector.broadcast %10 : vector<1x64xf32> to vector<64x64xf32>
    %13 = arith.addf %11, %12 : vector<64x64xf32>
    %cst = arith.constant 0.000000e+00 : f32
    %14 = vector.broadcast %cst : f32 to vector<64x64xf32>
    %15 = arith.cmpf oge, %13, %14 : vector<64x64xf32>
    %cst_6 = arith.constant 2.000000e-01 : f32
    %16 = vector.broadcast %cst_6 : f32 to vector<64x64xf32>
    %17 = arith.mulf %16, %13 : vector<64x64xf32>
    %18 = arith.select %15, %13, %17 : vector<64x64xi1>, vector<64x64xf32>
    %19 = arith.mulf %4, %18 : vector<64x64xf32>
    %cst_7 = arith.constant dense<0xFF800000> : vector<64xf32>
    %20 = vector.multi_reduction <maximumf>, %19, %cst_7 [1] : vector<64x64xf32> to vector<64xf32>
    %21 = vector.shape_cast %20 : vector<64xf32> to vector<64x1xf32>
    %22 = vector.broadcast %21 : vector<64x1xf32> to vector<64x64xf32>
    %23 = arith.subf %19, %22 : vector<64x64xf32>
    %24 = math.exp %23 : vector<64x64xf32>
    %cst_8 = arith.constant dense<0.000000e+00> : vector<64xf32>
    %25 = vector.multi_reduction <add>, %24, %cst_8 [1] : vector<64x64xf32> to vector<64xf32>
    %26 = vector.shape_cast %25 : vector<64xf32> to vector<64x1xf32>
    %27 = tpu.reciprocal %26 : vector<64x1xf32> -> vector<64x1xf32>
    %28 = vector.broadcast %27 : vector<64x1xf32> to vector<64x64xf32>
    %29 = arith.mulf %24, %28 : vector<64x64xf32>
    %c0_9 = arith.constant 0 : index
    %c0_10 = arith.constant 0 : index
    %c0_11 = arith.constant 0 : index
    %c0_12 = arith.constant 0 : index
    %30 = vector.load %arg8[%c0_9, %c0_10, %c0_11, %c0_12] : memref<1x4x64x64xf32, #tpu.memory_space<vmem>>, vector<1x1x64x64xf32>
    %31 = vector.shape_cast %30 : vector<1x1x64x64xf32> to vector<64x64xf32>
    %32 = vector.shape_cast %29 : vector<64x64xf32> to vector<1x1x64x64xf32>
    tpu.vector_store %arg8[%c0_9, %c0_10, %c0_11, %c0_12], %32 {strides = array<i32>} : memref<1x4x64x64xf32, #tpu.memory_space<vmem>>, vector<1x1x64x64xf32>,
    %c0_13 = arith.constant 0 : index
    %c0_14 = arith.constant 0 : index
    %33 = vector.load %arg9[%c0_13, %c0_14] : memref<64x128xf32, #tpu.memory_space<vmem>>, vector<64x32xf32>
    %cst_15 = arith.constant dense<0.000000e+00> : vector<64x32xf32>
    %34 = tpu.matmul %29, %33, %cst_15 {dimension_numbers = #tpu.dot_dimension_numbers<[1], [0], [0], [1], [0, 0, 1, 1], [], []>} : vector<64x64xf32>, vector<64x32xf32>, vector<64x32xf32> -> vector<64x32xf32>
    %35 = vector.extract_strided_slice %8 {offsets = [0, 1], sizes = [64, 1], strides = [1, 1]} : vector<64x4xf32> to vector<64x1xf32>
    %c1 = arith.constant 1 : index
    %c0_16 = arith.constant 0 : index
    %36 = vector.load %arg11[%c1, %c0_16] : memref<4x64xf32, #tpu.memory_space<vmem>>, vector<1x64xf32>
    %37 = vector.broadcast %35 : vector<64x1xf32> to vector<64x64xf32>
    %38 = vector.broadcast %36 : vector<1x64xf32> to vector<64x64xf32>
    %39 = arith.addf %37, %38 : vector<64x64xf32>
    %cst_17 = arith.constant 0.000000e+00 : f32
    %40 = vector.broadcast %cst_17 : f32 to vector<64x64xf32>
    %41 = arith.cmpf oge, %39, %40 : vector<64x64xf32>
    %cst_18 = arith.constant 2.000000e-01 : f32
    %42 = vector.broadcast %cst_18 : f32 to vector<64x64xf32>
    %43 = arith.mulf %42, %39 : vector<64x64xf32>
    %44 = arith.select %41, %39, %43 : vector<64x64xi1>, vector<64x64xf32>
    %45 = arith.mulf %4, %44 : vector<64x64xf32>
    %cst_19 = arith.constant dense<0xFF800000> : vector<64xf32>
    %46 = vector.multi_reduction <maximumf>, %45, %cst_19 [1] : vector<64x64xf32> to vector<64xf32>
    %47 = vector.shape_cast %46 : vector<64xf32> to vector<64x1xf32>
    %48 = vector.broadcast %47 : vector<64x1xf32> to vector<64x64xf32>
    %49 = arith.subf %45, %48 : vector<64x64xf32>
    %50 = math.exp %49 : vector<64x64xf32>
    %cst_20 = arith.constant dense<0.000000e+00> : vector<64xf32>
    %51 = vector.multi_reduction <add>, %50, %cst_20 [1] : vector<64x64xf32> to vector<64xf32>
    %52 = vector.shape_cast %51 : vector<64xf32> to vector<64x1xf32>
    %53 = tpu.reciprocal %52 : vector<64x1xf32> -> vector<64x1xf32>
    %54 = vector.broadcast %53 : vector<64x1xf32> to vector<64x64xf32>
    %55 = arith.mulf %50, %54 : vector<64x64xf32>
    %c0_21 = arith.constant 0 : index
    %c1_22 = arith.constant 1 : index
    %c0_23 = arith.constant 0 : index
    %c0_24 = arith.constant 0 : index
    %56 = vector.load %arg8[%c0_21, %c1_22, %c0_23, %c0_24] : memref<1x4x64x64xf32, #tpu.memory_space<vmem>>, vector<1x1x64x64xf32>
    %57 = vector.shape_cast %56 : vector<1x1x64x64xf32> to vector<64x64xf32>
    %58 = vector.shape_cast %55 : vector<64x64xf32> to vector<1x1x64x64xf32>
    tpu.vector_store %arg8[%c0_21, %c1_22, %c0_23, %c0_24], %58 {strides = array<i32>} : memref<1x4x64x64xf32, #tpu.memory_space<vmem>>, vector<1x1x64x64xf32>,
    %c0_25 = arith.constant 0 : index
    %c32 = arith.constant 32 : index
    %59 = vector.load %arg9[%c0_25, %c32] : memref<64x128xf32, #tpu.memory_space<vmem>>, vector<64x32xf32>
    %cst_26 = arith.constant dense<0.000000e+00> : vector<64x32xf32>
    %60 = tpu.matmul %55, %59, %cst_26 {dimension_numbers = #tpu.dot_dimension_numbers<[1], [0], [0], [1], [0, 0, 1, 1], [], []>} : vector<64x64xf32>, vector<64x32xf32>, vector<64x32xf32> -> vector<64x32xf32>
    %61 = vector.extract_strided_slice %8 {offsets = [0, 2], sizes = [64, 1], strides = [1, 1]} : vector<64x4xf32> to vector<64x1xf32>
    %c2 = arith.constant 2 : index
    %c0_27 = arith.constant 0 : index
    %62 = vector.load %arg11[%c2, %c0_27] : memref<4x64xf32, #tpu.memory_space<vmem>>, vector<1x64xf32>
    %63 = vector.broadcast %61 : vector<64x1xf32> to vector<64x64xf32>
    %64 = vector.broadcast %62 : vector<1x64xf32> to vector<64x64xf32>
    %65 = arith.addf %63, %64 : vector<64x64xf32>
    %cst_28 = arith.constant 0.000000e+00 : f32
    %66 = vector.broadcast %cst_28 : f32 to vector<64x64xf32>
    %67 = arith.cmpf oge, %65, %66 : vector<64x64xf32>
    %cst_29 = arith.constant 2.000000e-01 : f32
    %68 = vector.broadcast %cst_29 : f32 to vector<64x64xf32>
    %69 = arith.mulf %68, %65 : vector<64x64xf32>
    %70 = arith.select %67, %65, %69 : vector<64x64xi1>, vector<64x64xf32>
    %71 = arith.mulf %4, %70 : vector<64x64xf32>
    %cst_30 = arith.constant dense<0xFF800000> : vector<64xf32>
    %72 = vector.multi_reduction <maximumf>, %71, %cst_30 [1] : vector<64x64xf32> to vector<64xf32>
    %73 = vector.shape_cast %72 : vector<64xf32> to vector<64x1xf32>
    %74 = vector.broadcast %73 : vector<64x1xf32> to vector<64x64xf32>
    %75 = arith.subf %71, %74 : vector<64x64xf32>
    %76 = math.exp %75 : vector<64x64xf32>
    %cst_31 = arith.constant dense<0.000000e+00> : vector<64xf32>
    %77 = vector.multi_reduction <add>, %76, %cst_31 [1] : vector<64x64xf32> to vector<64xf32>
    %78 = vector.shape_cast %77 : vector<64xf32> to vector<64x1xf32>
    %79 = tpu.reciprocal %78 : vector<64x1xf32> -> vector<64x1xf32>
    %80 = vector.broadcast %79 : vector<64x1xf32> to vector<64x64xf32>
    %81 = arith.mulf %76, %80 : vector<64x64xf32>
    %c0_32 = arith.constant 0 : index
    %c2_33 = arith.constant 2 : index
    %c0_34 = arith.constant 0 : index
    %c0_35 = arith.constant 0 : index
    %82 = vector.load %arg8[%c0_32, %c2_33, %c0_34, %c0_35] : memref<1x4x64x64xf32, #tpu.memory_space<vmem>>, vector<1x1x64x64xf32>
    %83 = vector.shape_cast %82 : vector<1x1x64x64xf32> to vector<64x64xf32>
    %84 = vector.shape_cast %81 : vector<64x64xf32> to vector<1x1x64x64xf32>
    tpu.vector_store %arg8[%c0_32, %c2_33, %c0_34, %c0_35], %84 {strides = array<i32>} : memref<1x4x64x64xf32, #tpu.memory_space<vmem>>, vector<1x1x64x64xf32>,
    %c0_36 = arith.constant 0 : index
    %c64 = arith.constant 64 : index
    %85 = vector.load %arg9[%c0_36, %c64] : memref<64x128xf32, #tpu.memory_space<vmem>>, vector<64x32xf32>
    %cst_37 = arith.constant dense<0.000000e+00> : vector<64x32xf32>
    %86 = tpu.matmul %81, %85, %cst_37 {dimension_numbers = #tpu.dot_dimension_numbers<[1], [0], [0], [1], [0, 0, 1, 1], [], []>} : vector<64x64xf32>, vector<64x32xf32>, vector<64x32xf32> -> vector<64x32xf32>
    %87 = vector.extract_strided_slice %8 {offsets = [0, 3], sizes = [64, 1], strides = [1, 1]} : vector<64x4xf32> to vector<64x1xf32>
    %c3 = arith.constant 3 : index
    %c0_38 = arith.constant 0 : index
    %88 = vector.load %arg11[%c3, %c0_38] : memref<4x64xf32, #tpu.memory_space<vmem>>, vector<1x64xf32>
    %89 = vector.broadcast %87 : vector<64x1xf32> to vector<64x64xf32>
    %90 = vector.broadcast %88 : vector<1x64xf32> to vector<64x64xf32>
    %91 = arith.addf %89, %90 : vector<64x64xf32>
    %cst_39 = arith.constant 0.000000e+00 : f32
    %92 = vector.broadcast %cst_39 : f32 to vector<64x64xf32>
    %93 = arith.cmpf oge, %91, %92 : vector<64x64xf32>
    %cst_40 = arith.constant 2.000000e-01 : f32
    %94 = vector.broadcast %cst_40 : f32 to vector<64x64xf32>
    %95 = arith.mulf %94, %91 : vector<64x64xf32>
    %96 = arith.select %93, %91, %95 : vector<64x64xi1>, vector<64x64xf32>
    %97 = arith.mulf %4, %96 : vector<64x64xf32>
    %cst_41 = arith.constant dense<0xFF800000> : vector<64xf32>
    %98 = vector.multi_reduction <maximumf>, %97, %cst_41 [1] : vector<64x64xf32> to vector<64xf32>
    %99 = vector.shape_cast %98 : vector<64xf32> to vector<64x1xf32>
    %100 = vector.broadcast %99 : vector<64x1xf32> to vector<64x64xf32>
    %101 = arith.subf %97, %100 : vector<64x64xf32>
    %102 = math.exp %101 : vector<64x64xf32>
    %cst_42 = arith.constant dense<0.000000e+00> : vector<64xf32>
    %103 = vector.multi_reduction <add>, %102, %cst_42 [1] : vector<64x64xf32> to vector<64xf32>
    %104 = vector.shape_cast %103 : vector<64xf32> to vector<64x1xf32>
    %105 = tpu.reciprocal %104 : vector<64x1xf32> -> vector<64x1xf32>
    %106 = vector.broadcast %105 : vector<64x1xf32> to vector<64x64xf32>
    %107 = arith.mulf %102, %106 : vector<64x64xf32>
    %c0_43 = arith.constant 0 : index
    %c3_44 = arith.constant 3 : index
    %c0_45 = arith.constant 0 : index
    %c0_46 = arith.constant 0 : index
    %108 = vector.load %arg8[%c0_43, %c3_44, %c0_45, %c0_46] : memref<1x4x64x64xf32, #tpu.memory_space<vmem>>, vector<1x1x64x64xf32>
    %109 = vector.shape_cast %108 : vector<1x1x64x64xf32> to vector<64x64xf32>
    %110 = vector.shape_cast %107 : vector<64x64xf32> to vector<1x1x64x64xf32>
    tpu.vector_store %arg8[%c0_43, %c3_44, %c0_45, %c0_46], %110 {strides = array<i32>} : memref<1x4x64x64xf32, #tpu.memory_space<vmem>>, vector<1x1x64x64xf32>,
    %c0_47 = arith.constant 0 : index
    %c96 = arith.constant 96 : index
    %111 = vector.load %arg9[%c0_47, %c96] : memref<64x128xf32, #tpu.memory_space<vmem>>, vector<64x32xf32>
    %cst_48 = arith.constant dense<0.000000e+00> : vector<64x32xf32>
    %112 = tpu.matmul %107, %111, %cst_48 {dimension_numbers = #tpu.dot_dimension_numbers<[1], [0], [0], [1], [0, 0, 1, 1], [], []>} : vector<64x64xf32>, vector<64x32xf32>, vector<64x32xf32> -> vector<64x32xf32>
    %113 = tpu.concatenate %34, %60, %86, %112 in 1 : vector<64x32xf32>, vector<64x32xf32>, vector<64x32xf32>, vector<64x32xf32> -> vector<64x128xf32>
    %c0_49 = arith.constant 0 : index
    %c0_50 = arith.constant 0 : index
    %114 = vector.load %arg6[%c0_49, %c0_50] : memref<1x128xf32, #tpu.memory_space<vmem>>, vector<1x128xf32>
    %115 = vector.broadcast %114 : vector<1x128xf32> to vector<64x128xf32>
    %116 = arith.addf %113, %115 : vector<64x128xf32>
    %c0_51 = arith.constant 0 : index
    %c0_52 = arith.constant 0 : index
    %c0_53 = arith.constant 0 : index
    %117 = vector.load %arg7[%c0_51, %c0_52, %c0_53] : memref<1x64x128xf32, #tpu.memory_space<vmem>>, vector<1x64x128xf32>
    %118 = vector.shape_cast %117 : vector<1x64x128xf32> to vector<64x128xf32>
    %119 = vector.shape_cast %116 : vector<64x128xf32> to vector<1x64x128xf32>
    tpu.vector_store %arg7[%c0_51, %c0_52, %c0_53], %119 {strides = array<i32>} : memref<1x64x128xf32, #tpu.memory_space<vmem>>, vector<1x64x128xf32>,
    return
  }
  func.func @transform_0(%arg0: i32, %arg1: i32) -> (i32, i32, i32) {
    %c0_i32 = arith.constant 0 : i32
    %c0_i32_0 = arith.constant 0 : i32
    %c0_i32_1 = arith.constant 0 : i32
    return %arg0, %c0_i32, %c0_i32_0 : i32, i32, i32
  }
  func.func @transform_1(%arg0: i32, %arg1: i32) -> (i32, i32) {
    %c0_i32 = arith.constant 0 : i32
    %c0_i32_0 = arith.constant 0 : i32
    %c0_i32_1 = arith.constant 0 : i32
    return %c0_i32, %c0_i32_0 : i32, i32
  }
  func.func @transform_2(%arg0: i32, %arg1: i32) -> (i32, i32) {
    %c0_i32 = arith.constant 0 : i32
    %c0_i32_0 = arith.constant 0 : i32
    %c0_i32_1 = arith.constant 0 : i32
    return %c0_i32, %c0_i32_0 : i32, i32
  }
  func.func @transform_3(%arg0: i32, %arg1: i32) -> (i32, i32, i32) {
    %c0_i32 = arith.constant 0 : i32
    %c0_i32_0 = arith.constant 0 : i32
    return %arg0, %arg1, %c0_i32 : i32, i32, i32
  }
  func.func @transform_4(%arg0: i32, %arg1: i32) -> (i32, i32) {
    %c0_i32 = arith.constant 0 : i32
    %c0_i32_0 = arith.constant 0 : i32
    %c0_i32_1 = arith.constant 0 : i32
    return %c0_i32, %c0_i32_0 : i32, i32
  }
  func.func @transform_5(%arg0: i32, %arg1: i32) -> (i32, i32, i32) {
    %c0_i32 = arith.constant 0 : i32
    %c0_i32_0 = arith.constant 0 : i32
    return %arg0, %arg1, %c0_i32 : i32, i32, i32
  }
  func.func @transform_6(%arg0: i32, %arg1: i32) -> (i32, i32, i32, i32) {
    %c0_i32 = arith.constant 0 : i32
    %c0_i32_0 = arith.constant 0 : i32
    %c0_i32_1 = arith.constant 0 : i32
    return %arg0, %c0_i32, %arg1, %c0_i32_0 : i32, i32, i32, i32
  }
}

</mosaic_0001>

<llo_original>
// kernel: tpu_custom_call.1
$region0: #{tpu_custom_call.1}
  #allocation0 [shape = 'u32[]', space=smem, size = 0x4, offset = 0x4, fixed_abs, tag = 'smem constant byte address 0x4 - core index']
  #allocation1 [shape = 'u32[72,128]{1,0:T(1,128)}', space=vmem, size = 0x9000, scoped, tag = 'internal scratch']
  #allocation2 [shape = 'f32[64,128]{1,0:T(8,128)}', space=vmem, size = 0x8000, scoped, tag = 'scratch operand']
  #allocation3 [shape = 'f32[64,4]{1,0:T(8,128)}', space=vmem, size = 0x8000, scoped, tag = 'scratch operand']
  #allocation4 [shape = 'f32[4,64]{1,0:T(4,128)}', space=vmem, size = 0x800, scoped, tag = 'scratch operand']
  %s0 = inlined_call_operand.vmem [shape: f32[2,64,16], index: 0, kind: input, shape index: {}]
  %s1 = inlined_call_operand.vmem [shape: f32[16,128], index: 1, kind: input, shape index: {}]
  %s2 = inlined_call_operand.vmem [shape: f32[16,8], index: 2, kind: input, shape index: {}]
  %s3 = inlined_call_operand.vmem [shape: f32[2,64,64], index: 3, kind: input, shape index: {}]
  %s4 = inlined_call_operand.vmem [shape: f32[1,128], index: 4, kind: input, shape index: {}]
  %s5 = inlined_call_operand.hbm [shape: f32[2,64,128], index: 5, kind: output, shape index: {0}]
  %s6 = inlined_call_operand.hbm [shape: f32[2,4,64,64], index: 6, kind: output, shape index: {1}]
  %7 = xla_tuple %s5, %s6
  %s8 = sld [smem:[#allocation0]]
  $region65: #{tpu_custom_call.1} parent=0
    _
  %s10 = ssub.s32 1, %s8
  %s11 = scalar_select 0, %s10, %s8
  $region1: #{tpu_custom_call.1} parent=0
    #allocation5 [shape = 'u8[65536]{0}', space=vmem, size = 0x10000, scoped, tag = 'output window, operand 0']
    #allocation6 [shape = 's32[2]{0}', space=sflag, size = 0x8, scoped, tag = 'scoped memory for tpu_custom_call.1']
    #allocation7 [shape = 'u8[262144]{0}', space=vmem, size = 0x40000, scoped, tag = 'output window, operand 1']
    #allocation8 [shape = 's32[2]{0}', space=sflag, size = 0x8, scoped, tag = 'scoped memory for tpu_custom_call.1']
    %12 = vsyncpa [#allocation6], 0
    %s13 = scalar_lea.sflag [#allocation6], 1
    %14 = vsyncpa %s13, 0
    %15 = vsyncpa [#allocation8], 0
    %s16 = scalar_lea.sflag [#allocation8], 1
    %17 = vsyncpa %s16, 0
    loop: start=0, step=1, limit=4
    $region2: #{tpu_custom_call.1} parent=1 // loop_pre_header
      _
    $region3: #{tpu_custom_call.1} parent=1 // loop_header
      %s19 = sphi 0, %s23
      %p20 = scmp.ge.s32.totalorder %s19, 4
      %s26 = sphi 0, %s38
      %s27 = sphi 0, %s34
      %s28 = sphi 0, %s26
      %s29 = sphi 0, %s27
      %s30 = sphi 0, %s28
      %s31 = sphi 0, %s29
      %s41 = sphi 0, %s43
      %s44 = sphi 0, %s41
      %s45 = sphi 0, %s44
      %s61 = sphi 0, %s45
      %s65 = sphi 0, %s65
      %s67 = sphi 0, %s65
      %s68 = sphi 0, %s67
      %s82 = sphi 0, %s68
      %s86 = sphi 0, %s86
      %s88 = sphi 0, %s86
      %s89 = sphi 0, %s88
      %s103 = sphi 0, %s89
      %s111 = sphi 0, %s113
      %s114 = sphi 0, %s111
      %s115 = sphi 0, %s114
      %s131 = sphi 0, %s115
      %s135 = sphi 0, %s135
      %s137 = sphi 0, %s135
      %s138 = sphi 0, %s137
      %s152 = sphi 0, %s138
      %s160 = sphi 0, %s162
      %s163 = sphi 0, %s160
      %s164 = sphi 0, %s163
      %s180 = sphi 0, %s164
      %s188 = sphi 0, %s190
      %s191 = sphi 0, %s188
      %s192 = sphi 0, %s191
      %s208 = sphi 0, %s192
    $region4: #{tpu_custom_call.1} parent=1 // loop_header_branch
      %22 = sbr.rel (%p20) target = $region8
    $region5: #{tpu_custom_call.1} parent=1 // loop_body
      %s24 = ssub.s32 %s19, 1
      %s25 = ssub.s32 %s19, 2
      %s32 = sadd.s32 1, %s27
      %p33 = scmp.ge.s32.totalorder %s32, 1
      %s34 = scalar_select %p33, 0, %s32
      %s35 = sadd.s32 1, %s26
      %s36 = scalar_select %p33, %s35, %s26
      %p37 = scmp.ge.s32.totalorder %s36, 2
      %s38 = scalar_select %p37, 0, %s36
      %s39 = ssub.s32 %s26, %s38
      %p40 = scmp.eq.s32.totalorder %s39, 0
      %s42 = sadd.s32 %s41, 1
      %s43 = scalar_select %p40, %s41, %s42
      %p46 = pneg %p40
      %p47 = scmp.eq.s32.totalorder %s19, 1
      %p48 = por %p46, %p47
      %p49 = scmp.ne.s32.totalorder %s41, %s44
      %p50 = scmp.eq.s32.totalorder %s19, 0
      %p51 = por %p49, %p50
      %p52 = scmp.ne.s32.totalorder %s41, %s44
      %p53 = scmp.eq.s32.totalorder %s24, 1
      %p54 = por %p52, %p53
      %p55 = scmp.ne.s32.totalorder %s44, %s45
      %p56 = scmp.eq.s32.totalorder %s24, 0
      %p57 = por %p55, %p56
      %p58 = scmp.ne.s32.totalorder %s44, %s45
      %p59 = scmp.eq.s32.totalorder %s25, 1
      %p60 = por %p58, %p59
      %p62 = scmp.ne.s32.totalorder %s45, %s61
      %p63 = scmp.eq.s32.totalorder %s25, 0
      %p64 = por %p62, %p63
      %s66 = sadd.s32 %s65, 1
      %p69 = scmp.eq.s32.totalorder %s19, 1
      %p70 = scmp.ne.s32.totalorder %s65, %s67
      %p71 = scmp.eq.s32.totalorder %s19, 0
      %p72 = por %p70, %p71
      %p73 = scmp.ne.s32.totalorder %s65, %s67
      %p74 = scmp.eq.s32.totalorder %s24, 1
      %p75 = por %p73, %p74
      %p76 = scmp.ne.s32.totalorder %s67, %s68
      %p77 = scmp.eq.s32.totalorder %s24, 0
      %p78 = por %p76, %p77
      %p79 = scmp.ne.s32.totalorder %s67, %s68
      %p80 = scmp.eq.s32.totalorder %s25, 1
      %p81 = por %p79, %p80
      %p83 = scmp.ne.s32.totalorder %s68, %s82
      %p84 = scmp.eq.s32.totalorder %s25, 0
      %p85 = por %p83, %p84
      %s87 = sadd.s32 %s86, 1
      %p90 = scmp.eq.s32.totalorder %s19, 1
      %p91 = scmp.ne.s32.totalorder %s86, %s88
      %p92 = scmp.eq.s32.totalorder %s19, 0
      %p93 = por %p91, %p92
      %p94 = scmp.ne.s32.totalorder %s86, %s88
      %p95 = scmp.eq.s32.totalorder %s24, 1
      %p96 = por %p94, %p95
      %p97 = scmp.ne.s32.totalorder %s88, %s89
      %p98 = scmp.eq.s32.totalorder %s24, 0
      %p99 = por %p97, %p98
      %p100 = scmp.ne.s32.totalorder %s88, %s89
      %p101 = scmp.eq.s32.totalorder %s25, 1
      %p102 = por %p100, %p101
      %p104 = scmp.ne.s32.totalorder %s89, %s103
      %p105 = scmp.eq.s32.totalorder %s25, 0
      %p106 = por %p104, %p105
      %s107 = ssub.s32 %s26, %s38
      %s108 = ssub.s32 %s27, %s34
      %s109 = sor.u32 %s107, %s108
      %p110 = scmp.eq.s32.totalorder %s109, 0
      %s112 = sadd.s32 %s111, 1
      %s113 = scalar_select %p110, %s111, %s112
      %p116 = pneg %p110
      %p117 = scmp.eq.s32.totalorder %s19, 1
      %p118 = por %p116, %p117
      %p119 = scmp.ne.s32.totalorder %s111, %s114
      %p120 = scmp.eq.s32.totalorder %s19, 0
      %p121 = por %p119, %p120
      %p122 = scmp.ne.s32.totalorder %s111, %s114
      %p123 = scmp.eq.s32.totalorder %s24, 1
      %p124 = por %p122, %p123
      %p125 = scmp.ne.s32.totalorder %s114, %s115
      %p126 = scmp.eq.s32.totalorder %s24, 0
      %p127 = por %p125, %p126
      %p128 = scmp.ne.s32.totalorder %s114, %s115
      %p129 = scmp.eq.s32.totalorder %s25, 1
      %p130 = por %p128, %p129
      %p132 = scmp.ne.s32.totalorder %s115, %s131
      %p133 = scmp.eq.s32.totalorder %s25, 0
      %p134 = por %p132, %p133
      %s136 = sadd.s32 %s135, 1
      %p139 = scmp.eq.s32.totalorder %s19, 1
      %p140 = scmp.ne.s32.totalorder %s135, %s137
      %p141 = scmp.eq.s32.totalorder %s19, 0
      %p142 = por %p140, %p141
      %p143 = scmp.ne.s32.totalorder %s135, %s137
      %p144 = scmp.eq.s32.totalorder %s24, 1
      %p145 = por %p143, %p144
      %p146 = scmp.ne.s32.totalorder %s137, %s138
      %p147 = scmp.eq.s32.totalorder %s24, 0
      %p148 = por %p146, %p147
      %p149 = scmp.ne.s32.totalorder %s137, %s138
      %p150 = scmp.eq.s32.totalorder %s25, 1
      %p151 = por %p149, %p150
      %p153 = scmp.ne.s32.totalorder %s138, %s152
      %p154 = scmp.eq.s32.totalorder %s25, 0
      %p155 = por %p153, %p154
      %s156 = ssub.s32 %s26, %s38
      %s157 = ssub.s32 %s27, %s34
      %s158 = sor.u32 %s156, %s157
      %p159 = scmp.eq.s32.totalorder %s158, 0
      %s161 = sadd.s32 %s160, 1
      %s162 = scalar_select %p159, %s160, %s161
      %p165 = pneg %p159
      %p166 = scmp.eq.s32.totalorder %s19, 1
      %p167 = por %p165, %p166
      %p168 = scmp.ne.s32.totalorder %s160, %s163
      %p169 = scmp.eq.s32.totalorder %s19, 0
      %p170 = por %p168, %p169
      %p171 = scmp.ne.s32.totalorder %s160, %s163
      %p172 = scmp.eq.s32.totalorder %s24, 1
      %p173 = por %p171, %p172
      %p174 = scmp.ne.s32.totalorder %s163, %s164
      %p175 = scmp.eq.s32.totalorder %s24, 0
      %p176 = por %p174, %p175
      %p177 = scmp.ne.s32.totalorder %s163, %s164
      %p178 = scmp.eq.s32.totalorder %s25, 1
      %p179 = por %p177, %p178
      %p181 = scmp.ne.s32.totalorder %s164, %s180
      %p182 = scmp.eq.s32.totalorder %s25, 0
      %p183 = por %p181, %p182
      %s184 = ssub.s32 %s26, %s38
      %s185 = ssub.s32 %s27, %s34
      %s186 = sor.u32 %s184, %s185
      %p187 = scmp.eq.s32.totalorder %s186, 0
      %s189 = sadd.s32 %s188, 1
      %s190 = scalar_select %p187, %s188, %s189
      %p193 = pneg %p187
      %p194 = scmp.eq.s32.totalorder %s19, 1
      %p195 = por %p193, %p194
      %p196 = scmp.ne.s32.totalorder %s188, %s191
      %p197 = scmp.eq.s32.totalorder %s19, 0
      %p198 = por %p196, %p197
      %p199 = scmp.ne.s32.totalorder %s188, %s191
      %p200 = scmp.eq.s32.totalorder %s24, 1
      %p201 = por %p199, %p200
      %p202 = scmp.ne.s32.totalorder %s191, %s192
      %p203 = scmp.eq.s32.totalorder %s24, 0
      %p204 = por %p202, %p203
      %p205 = scmp.ne.s32.totalorder %s191, %s192
      %p206 = scmp.eq.s32.totalorder %s25, 1
      %p207 = por %p205, %p206
      %p209 = scmp.ne.s32.totalorder %s192, %s208
      %p210 = scmp.eq.s32.totalorder %s25, 0
      %p211 = por %p209, %p210
      %p212 = scmp.le.s32.totalorder 1, %s19
      %p213 = scmp.lt.s32.totalorder %s19, 3
      %p214 = pnand %p212, %p213
      %p215 = pneg %p214
      // Predicated region
      $region9: #{tpu_custom_call.1} parent=5 // pred_check
        _
      $region10: #{tpu_custom_call.1} parent=5 // pred_check_branch
        %217 = sbr.rel (%p214) target = $region12
      $region11: #{tpu_custom_call.1} parent=5 // pred_region
        %s218 = ssub.s32 %s19, 1
        // Predicated region
        $region13: #{tpu_custom_call.1} parent=11 // pred_check
          %p219 = pneg %p78
        $region14: #{tpu_custom_call.1} parent=11 // pred_check_branch
          %221 = sbr.rel (%p219) target = $region16
        $region15: #{tpu_custom_call.1} parent=11 // pred_region
          _
        $region16: #{tpu_custom_call.1} parent=11 // pred_fallthru
          _
        // Predicated region
        $region17: #{tpu_custom_call.1} parent=11 // pred_check
          %p222 = pneg %p99
        $region18: #{tpu_custom_call.1} parent=11 // pred_check_branch
          %224 = sbr.rel (%p222) target = $region20
        $region19: #{tpu_custom_call.1} parent=11 // pred_region
          _
        $region20: #{tpu_custom_call.1} parent=11 // pred_fallthru
          _
        // Predicated region
        $region21: #{tpu_custom_call.1} parent=11 // pred_check
          %p225 = pneg %p148
        $region22: #{tpu_custom_call.1} parent=11 // pred_check_branch
          %227 = sbr.rel (%p225) target = $region24
        $region23: #{tpu_custom_call.1} parent=11 // pred_region
          _
        $region24: #{tpu_custom_call.1} parent=11 // pred_fallthru
          _
      $region12: #{tpu_custom_call.1} parent=5 // pred_fallthru
        _
      %p228 = scmp.lt.s32.totalorder %s19, 2
      // Predicated region
      $region25: #{tpu_custom_call.1} parent=5 // pred_check
        %p229 = pneg %p228
      $region26: #{tpu_custom_call.1} parent=5 // pred_check_branch
        %231 = sbr.rel (%p229) target = $region28
      $region27: #{tpu_custom_call.1} parent=5 // pred_region
        // Predicated region
        $region29: #{tpu_custom_call.1} parent=27 // pred_check
          %p232 = pneg %p51
        $region30: #{tpu_custom_call.1} parent=27 // pred_check_branch
          %234 = sbr.rel (%p232) target = $region32
        $region31: #{tpu_custom_call.1} parent=27 // pred_region
          %p235 = scmp.lt.s32.totalorder %s26, 1
          %s236 = scalar_select %p235, %s26, 1
          %s237 = smul.addr %s236, 8
          %s238 = smul.addr %s237, 8
          %s239 = scalar_lea.vmem %s0, %s238
        $region32: #{tpu_custom_call.1} parent=27 // pred_fallthru
          _
        // Predicated region
        $region33: #{tpu_custom_call.1} parent=27 // pred_check
          %p240 = pneg %p121
        $region34: #{tpu_custom_call.1} parent=27 // pred_check_branch
          %242 = sbr.rel (%p240) target = $region36
        $region35: #{tpu_custom_call.1} parent=27 // pred_region
          %s243 = smul.u32 8, %s27
          %p244 = scmp.lt.s32.totalorder %s26, 1
          %s245 = scalar_select %p244, %s26, 1
          %p246 = scmp.lt.s32.totalorder %s243, 7
          %s247 = scalar_select %p246, %s243, 7
          %s248 = smul.addr %s245, 8
          %s249 = sadd.s32 %s247, %s248
          %s250 = smul.addr %s249, 8
          %s251 = scalar_lea.vmem %s3, %s250
          %s252 = smul.u32 8, %s27
        $region36: #{tpu_custom_call.1} parent=27 // pred_fallthru
          _
      $region28: #{tpu_custom_call.1} parent=5 // pred_fallthru
        _
      %p253 = scmp.le.s32.totalorder 1, %s19
      %p254 = scmp.lt.s32.totalorder %s19, 3
      %p255 = pnand %p253, %p254
      %p256 = pneg %p255
      // Predicated region
      $region37: #{tpu_custom_call.1} parent=5 // pred_check
        _
      $region38: #{tpu_custom_call.1} parent=5 // pred_check_branch
        %258 = sbr.rel (%p255) target = $region40
      $region39: #{tpu_custom_call.1} parent=5 // pred_region
        %s259 = ssub.s32 %s19, 1
        %p260 = scmp.lt.s32.totalorder %s28, 1
        %s261 = scalar_select %p260, %s28, 1
        %s262 = smul.addr %s261, 8
        %s263 = smul.addr %s262, 8
        %s264 = scalar_lea.vmem %s0, %s263
        %p265 = pneg %p57
        %p266 = pneg %p54
        %p267 = pneg %p78
        %p268 = pneg %p75
        %p269 = pneg %p99
        %p270 = pneg %p96
        %s271 = smul.u32 8, %s29
        %p272 = scmp.lt.s32.totalorder %s28, 1
        %s273 = scalar_select %p272, %s28, 1
        %p274 = scmp.lt.s32.totalorder %s271, 7
        %s275 = scalar_select %p274, %s271, 7
        %s276 = smul.addr %s273, 8
        %s277 = sadd.s32 %s275, %s276
        %s278 = smul.addr %s277, 8
        %s279 = scalar_lea.vmem %s3, %s278
        %p280 = pneg %p127
        %p281 = pneg %p124
        %p282 = pneg %p148
        %p283 = pneg %p145
        %p284 = pneg %p176
        %p285 = pneg %p173
        %s286 = sand.u32 %s163, 1
        %s287 = scalar_lea.sflag [#allocation6], %s286
        %s288 = sand.u32 %s163, 1
        %s289 = smul.addr %s288, 64
        %s290 = scalar_lea.vmem [#allocation5], %s289
        %p291 = pneg %p204
        %p292 = pneg %p201
        %s293 = sand.u32 %s191, 1
        %s294 = scalar_lea.sflag [#allocation8], %s293
        %s295 = sand.u32 %s191, 1
        %s296 = smul.addr %s295, 256
        %s297 = scalar_lea.vmem [#allocation7], %s296
        %p298 = scmp.lt.s32.totalorder %s28, 1
        %s299 = scalar_select %p298, %s28, 1
        %s300 = smul.addr %s299, 8
        %s301 = smul.addr %s300, 8
        %s302 = scalar_lea.vmem %s0, %s301
        %s303 = smul.u32 8, %s29
        %p304 = scmp.lt.s32.totalorder %s28, 1
        %s305 = scalar_select %p304, %s28, 1
        %p306 = scmp.lt.s32.totalorder %s303, 7
        %s307 = scalar_select %p306, %s303, 7
        %s308 = smul.addr %s305, 8
        %s309 = sadd.s32 %s307, %s308
        %s310 = smul.addr %s309, 8
        %s311 = scalar_lea.vmem %s3, %s310
        %s312 = smul.u32 8, %s29
        %s313 = smul.u32 8, %s29
        %s314 = smul.u32 8, %s29
        %p315 = scmp.eq.s32.totalorder %s29, 0
        // Predicated region
        $region41: #{tpu_custom_call.1} parent=39 // pred_check
          %p316 = pneg %p315
        $region42: #{tpu_custom_call.1} parent=39 // pred_check_branch
          %318 = sbr.rel (%p316) target = $region44
        $region43: #{tpu_custom_call.1} parent=39 // pred_region
          %v319 = vld [vmem:[%s302] sm:$0xff]
          %v320 = vld [vmem:[%s302 + $0x8] sm:$0xff]
          %v321 = vld [vmem:[%s302 + $0x10] sm:$0xff]
          %v322 = vld [vmem:[%s302 + $0x18] sm:$0xff]
          %v323 = vld [vmem:[%s302 + $0x20] sm:$0xff]
          %v324 = vld [vmem:[%s302 + $0x28] sm:$0xff]
          %v325 = vld [vmem:[%s302 + $0x30] sm:$0xff]
          %v326 = vld [vmem:[%s302 + $0x38] sm:$0xff]
          %v327 = vld [vmem:[%s1] sm:$0xff]
          %v328 = vld [vmem:[%s1 + $0x8] sm:$0xff]
          %vm329 = vcmask 130048
          %v331 = vsel %vm329, %v319, 0
          %v334 = vsel %vm329, %v320, 0
          %v337 = vsel %vm329, %v321, 0
          %v340 = vsel %vm329, %v322, 0
          %v343 = vsel %vm329, %v323, 0
          %v346 = vsel %vm329, %v324, 0
          %v349 = vsel %vm329, %v325, 0
          %v352 = vsel %vm329, %v326, 0
          %354 = vmatpush.msra.mxu0 0.0
          %355 = vmatpush.msra.mxu0 0.0
          %356 = vmatpush.msra.mxu0 0.0
          %357 = vmatpush.msra.mxu0 0.0
          %358 = vmatpush.msra.mxu0 0.0
          %359 = vmatpush.msra.mxu0 0.0
          %360 = vmatpush.msra.mxu0 0.0
          %361 = vmatpush.msra.mxu0 0.0
          %362 = vmatpush.msra.mxu0 0.0
          %363 = vmatpush.msra.mxu0 0.0
          %364 = vmatpush.msra.mxu0 0.0
          %365 = vmatpush.msra.mxu0 0.0
          %366 = vmatpush.msra.mxu0 0.0
          %367 = vmatpush.msra.mxu0 0.0
          %368 = vmatpush.msra.mxu0 %v328
          %369 = vmatpush.msra.mxu0 %v327
          %370 = vmatmul.f32.gmra.mxu0 %v331
          %v371 = vpop.f32.mrf.mxu0
          %v372 = vadd.f32 0.0, %v371
          %373 = vmatmul.f32.gmra.mxu0 %v334
          %v374 = vpop.f32.mrf.mxu0
          %v375 = vadd.f32 0.0, %v374
          %376 = vmatmul.f32.gmra.mxu0 %v337
          %v377 = vpop.f32.mrf.mxu0
          %v378 = vadd.f32 0.0, %v377
          %379 = vmatmul.f32.gmra.mxu0 %v340
          %v380 = vpop.f32.mrf.mxu0
          %v381 = vadd.f32 0.0, %v380
          %382 = vmatmul.f32.gmra.mxu0 %v343
          %v383 = vpop.f32.mrf.mxu0
          %v384 = vadd.f32 0.0, %v383
          %385 = vmatmul.f32.gmra.mxu0 %v346
          %v386 = vpop.f32.mrf.mxu0
          %v387 = vadd.f32 0.0, %v386
          %388 = vmatmul.f32.gmra.mxu0 %v349
          %v389 = vpop.f32.mrf.mxu0
          %v390 = vadd.f32 0.0, %v389
          %391 = vmatmul.f32.gmra.mxu0 %v352
          %v392 = vpop.f32.mrf.mxu0
          %v393 = vadd.f32 0.0, %v392
          %394 = vdwg.mxu0
          %395 = vst [vmem:[#allocation2] sm:$0xff] %v372
          %396 = vst [vmem:[#allocation2 + $0x8] sm:$0xff] %v375
          %397 = vst [vmem:[#allocation2 + $0x10] sm:$0xff] %v378
          %398 = vst [vmem:[#allocation2 + $0x18] sm:$0xff] %v381
          %399 = vst [vmem:[#allocation2 + $0x20] sm:$0xff] %v384
          %400 = vst [vmem:[#allocation2 + $0x28] sm:$0xff] %v387
          %401 = vst [vmem:[#allocation2 + $0x30] sm:$0xff] %v390
          %402 = vst [vmem:[#allocation2 + $0x38] sm:$0xff] %v393
          %v403 = vld [vmem:[%s2] sm:$0xff]
          %v404 = vld [vmem:[%s2 + $0x8] sm:$0xff]
          %405 = vmatpush.msra.mxu0 0.0
          %406 = vmatpush.msra.mxu0 0.0
          %407 = vmatpush.msra.mxu0 0.0
          %408 = vmatpush.msra.mxu0 0.0
          %409 = vmatpush.msra.mxu0 0.0
          %410 = vmatpush.msra.mxu0 0.0
          %411 = vmatpush.msra.mxu0 0.0
          %412 = vmatpush.msra.mxu0 0.0
          %413 = vmatpush.msra.mxu0 0.0
          %414 = vmatpush.msra.mxu0 0.0
          %415 = vmatpush.msra.mxu0 0.0
          %416 = vmatpush.msra.mxu0 0.0
          %417 = vmatpush.msra.mxu0 0.0
          %418 = vmatpush.msra.mxu0 0.0
          %419 = vmatpush.msra.mxu0 %v404
          %420 = vmatpush.msra.mxu0 %v403
          %421 = vmatmul.f32.gmra.mxu0 %v331
          %v422 = vpop.f32.mrf.mxu0
          %v423 = vadd.f32 0.0, %v422
          %424 = vmatmul.f32.gmra.mxu0 %v334
          %v425 = vpop.f32.mrf.mxu0
          %v426 = vadd.f32 0.0, %v425
          %427 = vmatmul.f32.gmra.mxu0 %v337
          %v428 = vpop.f32.mrf.mxu0
          %v429 = vadd.f32 0.0, %v428
          %430 = vmatmul.f32.gmra.mxu0 %v340
          %v431 = vpop.f32.mrf.mxu0
          %v432 = vadd.f32 0.0, %v431
          %433 = vmatmul.f32.gmra.mxu0 %v343
          %v434 = vpop.f32.mrf.mxu0
          %v435 = vadd.f32 0.0, %v434
          %436 = vmatmul.f32.gmra.mxu0 %v346
          %v437 = vpop.f32.mrf.mxu0
          %v438 = vadd.f32 0.0, %v437
          %439 = vmatmul.f32.gmra.mxu0 %v349
          %v440 = vpop.f32.mrf.mxu0
          %v441 = vadd.f32 0.0, %v440
          %442 = vmatmul.f32.gmra.mxu0 %v352
          %v443 = vpop.f32.mrf.mxu0
          %v444 = vadd.f32 0.0, %v443
          %445 = vdwg.mxu0
          %vm446 = vcmask 31744
          %447 = vst.msk [vmem:[#allocation3] sm:$0xff] %vm446, %v423
          %448 = vst.msk [vmem:[#allocation3 + $0x8] sm:$0xff] %vm446, %v426
          %449 = vst.msk [vmem:[#allocation3 + $0x10] sm:$0xff] %vm446, %v429
          %450 = vst.msk [vmem:[#allocation3 + $0x18] sm:$0xff] %vm446, %v432
          %451 = vst.msk [vmem:[#allocation3 + $0x20] sm:$0xff] %vm446, %v435
          %452 = vst.msk [vmem:[#allocation3 + $0x28] sm:$0xff] %vm446, %v438
          %453 = vst.msk [vmem:[#allocation3 + $0x30] sm:$0xff] %vm446, %v441
          %454 = vst.msk [vmem:[#allocation3 + $0x38] sm:$0xff] %vm446, %v444
          %463 = vrot.lane.b32.xlu0 %v423, 124
          %v464 = vpop.permute.xlu0 %463
          %465 = vrot.lane.b32.xlu0 %v426, 124
          %v466 = vpop.permute.xlu0 %465
          %467 = vrot.lane.b32.xlu0 %v429, 124
          %v468 = vpop.permute.xlu0 %467
          %469 = vrot.lane.b32.xlu0 %v432, 124
          %v470 = vpop.permute.xlu0 %469
          %471 = vrot.lane.b32.xlu0 %v435, 124
          %v472 = vpop.permute.xlu0 %471
          %473 = vrot.lane.b32.xlu0 %v438, 124
          %v474 = vpop.permute.xlu0 %473
          %475 = vrot.lane.b32.xlu0 %v441, 124
          %v476 = vpop.permute.xlu0 %475
          %477 = vrot.lane.b32.xlu0 %v444, 124
          %v478 = vpop.permute.xlu0 %477
          %487 = vxpose.xlu0.b32.start [1/16] %v464, 128
          %488 = vxpose.xlu0.b32.cont [2/16] %v466, 128
          %489 = vxpose.xlu0.b32.cont [3/16] %v468, 128
          %490 = vxpose.xlu0.b32.cont [4/16] %v470, 128
          %491 = vxpose.xlu0.b32.cont [5/16] %v472, 128
          %492 = vxpose.xlu0.b32.cont [6/16] %v474, 128
          %493 = vxpose.xlu0.b32.cont [7/16] %v476, 128
          %494 = vxpose.xlu0.b32.cont [8/16] %v478, 128
          %495 = vxpose.xlu0.b32.cont [9/16] 0.0, 128
          %496 = vxpose.xlu0.b32.cont [10/16] 0.0, 128
          %497 = vxpose.xlu0.b32.cont [11/16] 0.0, 128
          %498 = vxpose.xlu0.b32.cont [12/16] 0.0, 128
          %499 = vxpose.xlu0.b32.cont [13/16] 0.0, 128
          %500 = vxpose.xlu0.b32.cont [14/16] 0.0, 128
          %501 = vxpose.xlu0.b32.cont [15/16] 0.0, 128
          %502 = vxpose.xlu0.b32.end [16/16] 0.0, 128
          %v503 = vpop.trf.xlu0
          %v504 = vpop.trf.xlu0
          %v505 = vpop.trf.xlu0
          %v506 = vpop.trf.xlu0
          %v507 = vpop.trf.xlu0
          %v508 = vpop.trf.xlu0
          %v509 = vpop.trf.xlu0
          %v510 = vpop.trf.xlu0
          %v511 = vpop.trf.xlu0
          %v512 = vpop.trf.xlu0
          %v513 = vpop.trf.xlu0
          %v514 = vpop.trf.xlu0
          %v515 = vpop.trf.xlu0
          %v516 = vpop.trf.xlu0
          %v517 = vpop.trf.xlu0
          %v518 = vpop.trf.xlu0
          %vm519 = vcmask 519168
          %520 = vst.msk [vmem:[#allocation4] sm:$0xf] %vm519, %v503
        $region44: #{tpu_custom_call.1} parent=39 // pred_fallthru
          _
        %v521 = vld [vmem:[%s311] sm:$0xff]
        %v522 = vld [vmem:[%s311 + $0x8] sm:$0xff]
        %v523 = vld [vmem:[%s311 + $0x10] sm:$0xff]
        %v524 = vld [vmem:[%s311 + $0x18] sm:$0xff]
        %v525 = vld [vmem:[%s311 + $0x20] sm:$0xff]
        %v526 = vld [vmem:[%s311 + $0x28] sm:$0xff]
        %v527 = vld [vmem:[%s311 + $0x30] sm:$0xff]
        %v528 = vld [vmem:[%s311 + $0x38] sm:$0xff]
        %s529 = smul.u32 %s29, 64
        %s530 = scalar_lea.vmem [#allocation3], %s529
        %v531 = vld [vmem:[%s530] sm:$0xff]
        %v532 = vld [vmem:[%s530 + $0x8] sm:$0xff]
        %v533 = vld [vmem:[%s530 + $0x10] sm:$0xff]
        %v534 = vld [vmem:[%s530 + $0x18] sm:$0xff]
        %v535 = vld [vmem:[%s530 + $0x20] sm:$0xff]
        %v536 = vld [vmem:[%s530 + $0x28] sm:$0xff]
        %v537 = vld [vmem:[%s530 + $0x30] sm:$0xff]
        %v538 = vld [vmem:[%s530 + $0x38] sm:$0xff]
        %v539 = vld [vmem:[#allocation4] sm:$0x1]
        %541 = vset.pattern.permute.xlu0 0
        %542 = vperm.xlu0 %541, %v531
        %v543 = vpop.permute.xlu0 %542
        %546 = vset.pattern.permute.xlu0 0
        %547 = vperm.xlu0 %546, %v532
        %v548 = vpop.permute.xlu0 %547
        %551 = vset.pattern.permute.xlu0 0
        %552 = vperm.xlu0 %551, %v533
        %v553 = vpop.permute.xlu0 %552
        %556 = vset.pattern.permute.xlu0 0
        %557 = vperm.xlu0 %556, %v534
        %v558 = vpop.permute.xlu0 %557
        %561 = vset.pattern.permute.xlu0 0
        %562 = vperm.xlu0 %561, %v535
        %v563 = vpop.permute.xlu0 %562
        %566 = vset.pattern.permute.xlu0 0
        %567 = vperm.xlu0 %566, %v536
        %v568 = vpop.permute.xlu0 %567
        %571 = vset.pattern.permute.xlu0 0
        %572 = vperm.xlu0 %571, %v537
        %v573 = vpop.permute.xlu0 %572
        %576 = vset.pattern.permute.xlu0 0
        %577 = vperm.xlu0 %576, %v538
        %v578 = vpop.permute.xlu0 %577
        %v580 = vperm.slane %v539, 0
        %v581 = vadd.f32 %v543, %v580
        %v582 = vadd.f32 %v548, %v580
        %v583 = vadd.f32 %v553, %v580
        %v584 = vadd.f32 %v558, %v580
        %v585 = vadd.f32 %v563, %v580
        %v586 = vadd.f32 %v568, %v580
        %v587 = vadd.f32 %v573, %v580
        %v588 = vadd.f32 %v578, %v580
        %vm589 = vcmp.ge.f32.partialorder %v581, 0.0
        %vm590 = vcmp.ge.f32.partialorder %v582, 0.0
        %vm591 = vcmp.ge.f32.partialorder %v583, 0.0
        %vm592 = vcmp.ge.f32.partialorder %v584, 0.0
        %vm593 = vcmp.ge.f32.partialorder %v585, 0.0
        %vm594 = vcmp.ge.f32.partialorder %v586, 0.0
        %vm595 = vcmp.ge.f32.partialorder %v587, 0.0
        %vm596 = vcmp.ge.f32.partialorder %v588, 0.0
        %v597 = vmul.f32 %v581, 0.2
        %v598 = vmul.f32 %v582, 0.2
        %v599 = vmul.f32 %v583, 0.2
        %v600 = vmul.f32 %v584, 0.2
        %v601 = vmul.f32 %v585, 0.2
        %v602 = vmul.f32 %v586, 0.2
        %v603 = vmul.f32 %v587, 0.2
        %v604 = vmul.f32 %v588, 0.2
        %v605 = vsel %vm589, %v581, %v597
        %v606 = vsel %vm590, %v582, %v598
        %v607 = vsel %vm591, %v583, %v599
        %v608 = vsel %vm592, %v584, %v600
        %v609 = vsel %vm593, %v585, %v601
        %v610 = vsel %vm594, %v586, %v602
        %v611 = vsel %vm595, %v587, %v603
        %v612 = vsel %vm596, %v588, %v604
        %v613 = vmul.f32 %v521, %v605
        %v614 = vmul.f32 %v522, %v606
        %v615 = vmul.f32 %v523, %v607
        %v616 = vmul.f32 %v524, %v608
        %v617 = vmul.f32 %v525, %v609
        %v618 = vmul.f32 %v526, %v610
        %v619 = vmul.f32 %v527, %v611
        %v620 = vmul.f32 %v528, %v612
        %vm621 = vcmask 523264
        %v622 = vsel %vm621, %v613, -inf
        %623 = vmax.xlane.f32.xlu0 %v622
        %v624 = vpop.xlane.xlu0 %623
        %v625 = vsel %vm621, %v614, -inf
        %626 = vmax.xlane.f32.xlu0 %v625
        %v627 = vpop.xlane.xlu0 %626
        %v628 = vsel %vm621, %v615, -inf
        %629 = vmax.xlane.f32.xlu0 %v628
        %v630 = vpop.xlane.xlu0 %629
        %v631 = vsel %vm621, %v616, -inf
        %632 = vmax.xlane.f32.xlu0 %v631
        %v633 = vpop.xlane.xlu0 %632
        %v634 = vsel %vm621, %v617, -inf
        %635 = vmax.xlane.f32.xlu0 %v634
        %v636 = vpop.xlane.xlu0 %635
        %v637 = vsel %vm621, %v618, -inf
        %638 = vmax.xlane.f32.xlu0 %v637
        %v639 = vpop.xlane.xlu0 %638
        %v640 = vsel %vm621, %v619, -inf
        %641 = vmax.xlane.f32.xlu0 %v640
        %v642 = vpop.xlane.xlu0 %641
        %v643 = vsel %vm621, %v620, -inf
        %644 = vmax.xlane.f32.xlu0 %v643
        %v645 = vpop.xlane.xlu0 %644
        %v646 = vsub.f32 %v613, %v624
        %v647 = vsub.f32 %v614, %v627
        %v648 = vsub.f32 %v615, %v630
        %v649 = vsub.f32 %v616, %v633
        %v650 = vsub.f32 %v617, %v636
        %v651 = vsub.f32 %v618, %v639
        %v652 = vsub.f32 %v619, %v642
        %v653 = vsub.f32 %v620, %v645
        %v654 = vmul.f32 %v646, 1.442695
        %v655 = vpow.pop %v654
        %v656 = vmul.f32 %v647, 1.442695
        %v657 = vpow.pop %v656
        %v658 = vmul.f32 %v648, 1.442695
        %v659 = vpow.pop %v658
        %v660 = vmul.f32 %v649, 1.442695
        %v661 = vpow.pop %v660
        %v662 = vmul.f32 %v650, 1.442695
        %v663 = vpow.pop %v662
        %v664 = vmul.f32 %v651, 1.442695
        %v665 = vpow.pop %v664
        %v666 = vmul.f32 %v652, 1.442695
        %v667 = vpow.pop %v666
        %v668 = vmul.f32 %v653, 1.442695
        %v669 = vpow.pop %v668
        %v670 = vsel %vm621, %v655, 0.0
        %671 = vadd.xlane.f32.xlu0 %v670
        %v672 = vpop.xlane.xlu0 %671
        %v673 = vsel %vm621, %v657, 0.0
        %674 = vadd.xlane.f32.xlu0 %v673
        %v675 = vpop.xlane.xlu0 %674
        %v676 = vsel %vm621, %v659, 0.0
        %677 = vadd.xlane.f32.xlu0 %v676
        %v678 = vpop.xlane.xlu0 %677
        %v679 = vsel %vm621, %v661, 0.0
        %680 = vadd.xlane.f32.xlu0 %v679
        %v681 = vpop.xlane.xlu0 %680
        %v682 = vsel %vm621, %v663, 0.0
        %683 = vadd.xlane.f32.xlu0 %v682
        %v684 = vpop.xlane.xlu0 %683
        %v685 = vsel %vm621, %v665, 0.0
        %686 = vadd.xlane.f32.xlu0 %v685
        %v687 = vpop.xlane.xlu0 %686
        %v688 = vsel %vm621, %v667, 0.0
        %689 = vadd.xlane.f32.xlu0 %v688
        %v690 = vpop.xlane.xlu0 %689
        %v691 = vsel %vm621, %v669, 0.0
        %692 = vadd.xlane.f32.xlu0 %v691
        %v693 = vpop.xlane.xlu0 %692
        %v694 = vrcp.pop %v672
        %v695 = vmul.f32 %v672, %v694
        %v696 = vsub.f32 1.0, %v695
        %v697 = vmul.f32 %v694, %v696
        %v698 = vadd.f32 %v694, %v697
        %vm699 = vweird.f32 %v672
        %vm700 = vweird.f32 %v694
        %vm701 = vmor %vm699, %vm700
        %v702 = vsel %vm701, %v694, %v698
        %v703 = vand.u32 2147483647, %v672
        %vm704 = vcmp.eq.f32.partialorder %v703, 8.507059e+37
        %v705 = vand.u32 %v672, 2147483648
        %v706 = vor.u32 1.1754944e-38, %v705
        %v707 = vsel %vm704, %v706, %v702
        %v708 = vrcp.pop %v675
        %v709 = vmul.f32 %v675, %v708
        %v710 = vsub.f32 1.0, %v709
        %v711 = vmul.f32 %v708, %v710
        %v712 = vadd.f32 %v708, %v711
        %vm713 = vweird.f32 %v675
        %vm714 = vweird.f32 %v708
        %vm715 = vmor %vm713, %vm714
        %v716 = vsel %vm715, %v708, %v712
        %v717 = vand.u32 2147483647, %v675
        %vm718 = vcmp.eq.f32.partialorder %v717, 8.507059e+37
        %v719 = vand.u32 %v675, 2147483648
        %v720 = vor.u32 1.1754944e-38, %v719
        %v721 = vsel %vm718, %v720, %v716
        %v722 = vrcp.pop %v678
        %v723 = vmul.f32 %v678, %v722
        %v724 = vsub.f32 1.0, %v723
        %v725 = vmul.f32 %v722, %v724
        %v726 = vadd.f32 %v722, %v725
        %vm727 = vweird.f32 %v678
        %vm728 = vweird.f32 %v722
        %vm729 = vmor %vm727, %vm728
        %v730 = vsel %vm729, %v722, %v726
        %v731 = vand.u32 2147483647, %v678
        %vm732 = vcmp.eq.f32.partialorder %v731, 8.507059e+37
        %v733 = vand.u32 %v678, 2147483648
        %v734 = vor.u32 1.1754944e-38, %v733
        %v735 = vsel %vm732, %v734, %v730
        %v736 = vrcp.pop %v681
        %v737 = vmul.f32 %v681, %v736
        %v738 = vsub.f32 1.0, %v737
        %v739 = vmul.f32 %v736, %v738
        %v740 = vadd.f32 %v736, %v739
        %vm741 = vweird.f32 %v681
        %vm742 = vweird.f32 %v736
        %vm743 = vmor %vm741, %vm742
        %v744 = vsel %vm743, %v736, %v740
        %v745 = vand.u32 2147483647, %v681
        %vm746 = vcmp.eq.f32.partialorder %v745, 8.507059e+37
        %v747 = vand.u32 %v681, 2147483648
        %v748 = vor.u32 1.1754944e-38, %v747
        %v749 = vsel %vm746, %v748, %v744
        %v750 = vrcp.pop %v684
        %v751 = vmul.f32 %v684, %v750
        %v752 = vsub.f32 1.0, %v751
        %v753 = vmul.f32 %v750, %v752
        %v754 = vadd.f32 %v750, %v753
        %vm755 = vweird.f32 %v684
        %vm756 = vweird.f32 %v750
        %vm757 = vmor %vm755, %vm756
        %v758 = vsel %vm757, %v750, %v754
        %v759 = vand.u32 2147483647, %v684
        %vm760 = vcmp.eq.f32.partialorder %v759, 8.507059e+37
        %v761 = vand.u32 %v684, 2147483648
        %v762 = vor.u32 1.1754944e-38, %v761
        %v763 = vsel %vm760, %v762, %v758
        %v764 = vrcp.pop %v687
        %v765 = vmul.f32 %v687, %v764
        %v766 = vsub.f32 1.0, %v765
        %v767 = vmul.f32 %v764, %v766
        %v768 = vadd.f32 %v764, %v767
        %vm769 = vweird.f32 %v687
        %vm770 = vweird.f32 %v764
        %vm771 = vmor %vm769, %vm770
        %v772 = vsel %vm771, %v764, %v768
        %v773 = vand.u32 2147483647, %v687
        %vm774 = vcmp.eq.f32.partialorder %v773, 8.507059e+37
        %v775 = vand.u32 %v687, 2147483648
        %v776 = vor.u32 1.1754944e-38, %v775
        %v777 = vsel %vm774, %v776, %v772
        %v778 = vrcp.pop %v690
        %v779 = vmul.f32 %v690, %v778
        %v780 = vsub.f32 1.0, %v779
        %v781 = vmul.f32 %v778, %v780
        %v782 = vadd.f32 %v778, %v781
        %vm783 = vweird.f32 %v690
        %vm784 = vweird.f32 %v778
        %vm785 = vmor %vm783, %vm784
        %v786 = vsel %vm785, %v778, %v782
        %v787 = vand.u32 2147483647, %v690
        %vm788 = vcmp.eq.f32.partialorder %v787, 8.507059e+37
        %v789 = vand.u32 %v690, 2147483648
        %v790 = vor.u32 1.1754944e-38, %v789
        %v791 = vsel %vm788, %v790, %v786
        %v792 = vrcp.pop %v693
        %v793 = vmul.f32 %v693, %v792
        %v794 = vsub.f32 1.0, %v793
        %v795 = vmul.f32 %v792, %v794
        %v796 = vadd.f32 %v792, %v795
        %vm797 = vweird.f32 %v693
        %vm798 = vweird.f32 %v792
        %vm799 = vmor %vm797, %vm798
        %v800 = vsel %vm799, %v792, %v796
        %v801 = vand.u32 2147483647, %v693
        %vm802 = vcmp.eq.f32.partialorder %v801, 8.507059e+37
        %v803 = vand.u32 %v693, 2147483648
        %v804 = vor.u32 1.1754944e-38, %v803
        %v805 = vsel %vm802, %v804, %v800
        %v806 = vmul.f32 %v655, %v707
        %v807 = vmul.f32 %v657, %v721
        %v808 = vmul.f32 %v659, %v735
        %v809 = vmul.f32 %v661, %v749
        %v810 = vmul.f32 %v663, %v763
        %v811 = vmul.f32 %v665, %v777
        %v812 = vmul.f32 %v667, %v791
        %v813 = vmul.f32 %v669, %v805
        %814 = vst.msk [vmem:[%s297] sm:$0xff] %vm621, %v806
        %815 = vst.msk [vmem:[%s297 + $0x8] sm:$0xff] %vm621, %v807
        %816 = vst.msk [vmem:[%s297 + $0x10] sm:$0xff] %vm621, %v808
        %817 = vst.msk [vmem:[%s297 + $0x18] sm:$0xff] %vm621, %v809
        %818 = vst.msk [vmem:[%s297 + $0x20] sm:$0xff] %vm621, %v810
        %819 = vst.msk [vmem:[%s297 + $0x28] sm:$0xff] %vm621, %v811
        %820 = vst.msk [vmem:[%s297 + $0x30] sm:$0xff] %vm621, %v812
        %821 = vst.msk [vmem:[%s297 + $0x38] sm:$0xff] %vm621, %v813
        %v822 = vld [vmem:[#allocation2] sm:$0xff]
        %v823 = vld [vmem:[#allocation2 + $0x8] sm:$0xff]
        %v824 = vld [vmem:[#allocation2 + $0x10] sm:$0xff]
        %v825 = vld [vmem:[#allocation2 + $0x18] sm:$0xff]
        %v826 = vld [vmem:[#allocation2 + $0x20] sm:$0xff]
        %v827 = vld [vmem:[#allocation2 + $0x28] sm:$0xff]
        %v828 = vld [vmem:[#allocation2 + $0x30] sm:$0xff]
        %v829 = vld [vmem:[#allocation2 + $0x38] sm:$0xff]
        %v831 = vsel %vm621, %v806, 0
        %v834 = vsel %vm621, %v807, 0
        %v837 = vsel %vm621, %v808, 0
        %v840 = vsel %vm621, %v809, 0
        %v843 = vsel %vm621, %v810, 0
        %v846 = vsel %vm621, %v811, 0
        %v849 = vsel %vm621, %v812, 0
        %v852 = vsel %vm621, %v813, 0
        %854 = vmatpush.msra.mxu0 0.0
        %855 = vmatpush.msra.mxu0 0.0
        %856 = vmatpush.msra.mxu0 0.0
        %857 = vmatpush.msra.mxu0 0.0
        %858 = vmatpush.msra.mxu0 0.0
        %859 = vmatpush.msra.mxu0 0.0
        %860 = vmatpush.msra.mxu0 0.0
        %861 = vmatpush.msra.mxu0 0.0
        %862 = vmatpush.msra.mxu0 %v829
        %863 = vmatpush.msra.mxu0 %v828
        %864 = vmatpush.msra.mxu0 %v827
        %865 = vmatpush.msra.mxu0 %v826
        %866 = vmatpush.msra.mxu0 %v825
        %867 = vmatpush.msra.mxu0 %v824
        %868 = vmatpush.msra.mxu0 %v823
        %869 = vmatpush.msra.mxu0 %v822
        %870 = vmatmul.f32.gmra.mxu0 %v831
        %v871 = vpop.f32.mrf.mxu0
        %v872 = vadd.f32 0.0, %v871
        %873 = vmatmul.f32.gmra.mxu0 %v834
        %v874 = vpop.f32.mrf.mxu0
        %v875 = vadd.f32 0.0, %v874
        %876 = vmatmul.f32.gmra.mxu0 %v837
        %v877 = vpop.f32.mrf.mxu0
        %v878 = vadd.f32 0.0, %v877
        %879 = vmatmul.f32.gmra.mxu0 %v840
        %v880 = vpop.f32.mrf.mxu0
        %v881 = vadd.f32 0.0, %v880
        %882 = vmatmul.f32.gmra.mxu0 %v843
        %v883 = vpop.f32.mrf.mxu0
        %v884 = vadd.f32 0.0, %v883
        %885 = vmatmul.f32.gmra.mxu0 %v846
        %v886 = vpop.f32.mrf.mxu0
        %v887 = vadd.f32 0.0, %v886
        %888 = vmatmul.f32.gmra.mxu0 %v849
        %v889 = vpop.f32.mrf.mxu0
        %v890 = vadd.f32 0.0, %v889
        %891 = vmatmul.f32.gmra.mxu0 %v852
        %v892 = vpop.f32.mrf.mxu0
        %v893 = vadd.f32 0.0, %v892
        %894 = vdwg.mxu0
        %v895 = vld [vmem:[#allocation4 + $0x1] sm:$0x1]
        %896 = vset.pattern.permute.xlu0 1
        %897 = vperm.xlu0 %896, %v531
        %v898 = vpop.permute.xlu0 %897
        %900 = vset.pattern.permute.xlu0 1
        %901 = vperm.xlu0 %900, %v532
        %v902 = vpop.permute.xlu0 %901
        %904 = vset.pattern.permute.xlu0 1
        %905 = vperm.xlu0 %904, %v533
        %v906 = vpop.permute.xlu0 %905
        %908 = vset.pattern.permute.xlu0 1
        %909 = vperm.xlu0 %908, %v534
        %v910 = vpop.permute.xlu0 %909
        %912 = vset.pattern.permute.xlu0 1
        %913 = vperm.xlu0 %912, %v535
        %v914 = vpop.permute.xlu0 %913
        %916 = vset.pattern.permute.xlu0 1
        %917 = vperm.xlu0 %916, %v536
        %v918 = vpop.permute.xlu0 %917
        %920 = vset.pattern.permute.xlu0 1
        %921 = vperm.xlu0 %920, %v537
        %v922 = vpop.permute.xlu0 %921
        %924 = vset.pattern.permute.xlu0 1
        %925 = vperm.xlu0 %924, %v538
        %v926 = vpop.permute.xlu0 %925
        %v928 = vperm.slane %v895, 0
        %v929 = vadd.f32 %v898, %v928
        %v930 = vadd.f32 %v902, %v928
        %v931 = vadd.f32 %v906, %v928
        %v932 = vadd.f32 %v910, %v928
        %v933 = vadd.f32 %v914, %v928
        %v934 = vadd.f32 %v918, %v928
        %v935 = vadd.f32 %v922, %v928
        %v936 = vadd.f32 %v926, %v928
        %vm937 = vcmp.ge.f32.partialorder %v929, 0.0
        %vm938 = vcmp.ge.f32.partialorder %v930, 0.0
        %vm939 = vcmp.ge.f32.partialorder %v931, 0.0
        %vm940 = vcmp.ge.f32.partialorder %v932, 0.0
        %vm941 = vcmp.ge.f32.partialorder %v933, 0.0
        %vm942 = vcmp.ge.f32.partialorder %v934, 0.0
        %vm943 = vcmp.ge.f32.partialorder %v935, 0.0
        %vm944 = vcmp.ge.f32.partialorder %v936, 0.0
        %v945 = vmul.f32 %v929, 0.2
        %v946 = vmul.f32 %v930, 0.2
        %v947 = vmul.f32 %v931, 0.2
        %v948 = vmul.f32 %v932, 0.2
        %v949 = vmul.f32 %v933, 0.2
        %v950 = vmul.f32 %v934, 0.2
        %v951 = vmul.f32 %v935, 0.2
        %v952 = vmul.f32 %v936, 0.2
        %v953 = vsel %vm937, %v929, %v945
        %v954 = vsel %vm938, %v930, %v946
        %v955 = vsel %vm939, %v931, %v947
        %v956 = vsel %vm940, %v932, %v948
        %v957 = vsel %vm941, %v933, %v949
        %v958 = vsel %vm942, %v934, %v950
        %v959 = vsel %vm943, %v935, %v951
        %v960 = vsel %vm944, %v936, %v952
        %v961 = vmul.f32 %v521, %v953
        %v962 = vmul.f32 %v522, %v954
        %v963 = vmul.f32 %v523, %v955
        %v964 = vmul.f32 %v524, %v956
        %v965 = vmul.f32 %v525, %v957
        %v966 = vmul.f32 %v526, %v958
        %v967 = vmul.f32 %v527, %v959
        %v968 = vmul.f32 %v528, %v960
        %v969 = vsel %vm621, %v961, -inf
        %970 = vmax.xlane.f32.xlu0 %v969
        %v971 = vpop.xlane.xlu0 %970
        %v972 = vsel %vm621, %v962, -inf
        %973 = vmax.xlane.f32.xlu0 %v972
        %v974 = vpop.xlane.xlu0 %973
        %v975 = vsel %vm621, %v963, -inf
        %976 = vmax.xlane.f32.xlu0 %v975
        %v977 = vpop.xlane.xlu0 %976
        %v978 = vsel %vm621, %v964, -inf
        %979 = vmax.xlane.f32.xlu0 %v978
        %v980 = vpop.xlane.xlu0 %979
        %v981 = vsel %vm621, %v965, -inf
        %982 = vmax.xlane.f32.xlu0 %v981
        %v983 = vpop.xlane.xlu0 %982
        %v984 = vsel %vm621, %v966, -inf
        %985 = vmax.xlane.f32.xlu0 %v984
        %v986 = vpop.xlane.xlu0 %985
        %v987 = vsel %vm621, %v967, -inf
        %988 = vmax.xlane.f32.xlu0 %v987
        %v989 = vpop.xlane.xlu0 %988
        %v990 = vsel %vm621, %v968, -inf
        %991 = vmax.xlane.f32.xlu0 %v990
        %v992 = vpop.xlane.xlu0 %991
        %v993 = vsub.f32 %v961, %v971
        %v994 = vsub.f32 %v962, %v974
        %v995 = vsub.f32 %v963, %v977
        %v996 = vsub.f32 %v964, %v980
        %v997 = vsub.f32 %v965, %v983
        %v998 = vsub.f32 %v966, %v986
        %v999 = vsub.f32 %v967, %v989
        %v1000 = vsub.f32 %v968, %v992
        %v1001 = vmul.f32 %v993, 1.442695
        %v1002 = vpow.pop %v1001
        %v1003 = vmul.f32 %v994, 1.442695
        %v1004 = vpow.pop %v1003
        %v1005 = vmul.f32 %v995, 1.442695
        %v1006 = vpow.pop %v1005
        %v1007 = vmul.f32 %v996, 1.442695
        %v1008 = vpow.pop %v1007
        %v1009 = vmul.f32 %v997, 1.442695
        %v1010 = vpow.pop %v1009
        %v1011 = vmul.f32 %v998, 1.442695
        %v1012 = vpow.pop %v1011
        %v1013 = vmul.f32 %v999, 1.442695
        %v1014 = vpow.pop %v1013
        %v1015 = vmul.f32 %v1000, 1.442695
        %v1016 = vpow.pop %v1015
        %v1017 = vsel %vm621, %v1002, 0.0
        %1018 = vadd.xlane.f32.xlu0 %v1017
        %v1019 = vpop.xlane.xlu0 %1018
        %v1020 = vsel %vm621, %v1004, 0.0
        %1021 = vadd.xlane.f32.xlu0 %v1020
        %v1022 = vpop.xlane.xlu0 %1021
        %v1023 = vsel %vm621, %v1006, 0.0
        %1024 = vadd.xlane.f32.xlu0 %v1023
        %v1025 = vpop.xlane.xlu0 %1024
        %v1026 = vsel %vm621, %v1008, 0.0
        %1027 = vadd.xlane.f32.xlu0 %v1026
        %v1028 = vpop.xlane.xlu0 %1027
        %v1029 = vsel %vm621, %v1010, 0.0
        %1030 = vadd.xlane.f32.xlu0 %v1029
        %v1031 = vpop.xlane.xlu0 %1030
        %v1032 = vsel %vm621, %v1012, 0.0
        %1033 = vadd.xlane.f32.xlu0 %v1032
        %v1034 = vpop.xlane.xlu0 %1033
        %v1035 = vsel %vm621, %v1014, 0.0
        %1036 = vadd.xlane.f32.xlu0 %v1035
        %v1037 = vpop.xlane.xlu0 %1036
        %v1038 = vsel %vm621, %v1016, 0.0
        %1039 = vadd.xlane.f32.xlu0 %v1038
        %v1040 = vpop.xlane.xlu0 %1039
        %v1041 = vrcp.pop %v1019
        %v1042 = vmul.f32 %v1019, %v1041
        %v1043 = vsub.f32 1.0, %v1042
        %v1044 = vmul.f32 %v1041, %v1043
        %v1045 = vadd.f32 %v1041, %v1044
        %vm1046 = vweird.f32 %v1019
        %vm1047 = vweird.f32 %v1041
        %vm1048 = vmor %vm1046, %vm1047
        %v1049 = vsel %vm1048, %v1041, %v1045
        %v1050 = vand.u32 2147483647, %v1019
        %vm1051 = vcmp.eq.f32.partialorder %v1050, 8.507059e+37
        %v1052 = vand.u32 %v1019, 2147483648
        %v1053 = vor.u32 1.1754944e-38, %v1052
        %v1054 = vsel %vm1051, %v1053, %v1049
        %v1055 = vrcp.pop %v1022
        %v1056 = vmul.f32 %v1022, %v1055
        %v1057 = vsub.f32 1.0, %v1056
        %v1058 = vmul.f32 %v1055, %v1057
        %v1059 = vadd.f32 %v1055, %v1058
        %vm1060 = vweird.f32 %v1022
        %vm1061 = vweird.f32 %v1055
        %vm1062 = vmor %vm1060, %vm1061
        %v1063 = vsel %vm1062, %v1055, %v1059
        %v1064 = vand.u32 2147483647, %v1022
        %vm1065 = vcmp.eq.f32.partialorder %v1064, 8.507059e+37
        %v1066 = vand.u32 %v1022, 2147483648
        %v1067 = vor.u32 1.1754944e-38, %v1066
        %v1068 = vsel %vm1065, %v1067, %v1063
        %v1069 = vrcp.pop %v1025
        %v1070 = vmul.f32 %v1025, %v1069
        %v1071 = vsub.f32 1.0, %v1070
        %v1072 = vmul.f32 %v1069, %v1071
        %v1073 = vadd.f32 %v1069, %v1072
        %vm1074 = vweird.f32 %v1025
        %vm1075 = vweird.f32 %v1069
        %vm1076 = vmor %vm1074, %vm1075
        %v1077 = vsel %vm1076, %v1069, %v1073
        %v1078 = vand.u32 2147483647, %v1025
        %vm1079 = vcmp.eq.f32.partialorder %v1078, 8.507059e+37
        %v1080 = vand.u32 %v1025, 2147483648
        %v1081 = vor.u32 1.1754944e-38, %v1080
        %v1082 = vsel %vm1079, %v1081, %v1077
        %v1083 = vrcp.pop %v1028
        %v1084 = vmul.f32 %v1028, %v1083
        %v1085 = vsub.f32 1.0, %v1084
        %v1086 = vmul.f32 %v1083, %v1085
        %v1087 = vadd.f32 %v1083, %v1086
        %vm1088 = vweird.f32 %v1028
        %vm1089 = vweird.f32 %v1083
        %vm1090 = vmor %vm1088, %vm1089
        %v1091 = vsel %vm1090, %v1083, %v1087
        %v1092 = vand.u32 2147483647, %v1028
        %vm1093 = vcmp.eq.f32.partialorder %v1092, 8.507059e+37
        %v1094 = vand.u32 %v1028, 2147483648
        %v1095 = vor.u32 1.1754944e-38, %v1094
        %v1096 = vsel %vm1093, %v1095, %v1091
        %v1097 = vrcp.pop %v1031
        %v1098 = vmul.f32 %v1031, %v1097
        %v1099 = vsub.f32 1.0, %v1098
        %v1100 = vmul.f32 %v1097, %v1099
        %v1101 = vadd.f32 %v1097, %v1100
        %vm1102 = vweird.f32 %v1031
        %vm1103 = vweird.f32 %v1097
        %vm1104 = vmor %vm1102, %vm1103
        %v1105 = vsel %vm1104, %v1097, %v1101
        %v1106 = vand.u32 2147483647, %v1031
        %vm1107 = vcmp.eq.f32.partialorder %v1106, 8.507059e+37
        %v1108 = vand.u32 %v1031, 2147483648
        %v1109 = vor.u32 1.1754944e-38, %v1108
        %v1110 = vsel %vm1107, %v1109, %v1105
        %v1111 = vrcp.pop %v1034
        %v1112 = vmul.f32 %v1034, %v1111
        %v1113 = vsub.f32 1.0, %v1112
        %v1114 = vmul.f32 %v1111, %v1113
        %v1115 = vadd.f32 %v1111, %v1114
        %vm1116 = vweird.f32 %v1034
        %vm1117 = vweird.f32 %v1111
        %vm1118 = vmor %vm1116, %vm1117
        %v1119 = vsel %vm1118, %v1111, %v1115
        %v1120 = vand.u32 2147483647, %v1034
        %vm1121 = vcmp.eq.f32.partialorder %v1120, 8.507059e+37
        %v1122 = vand.u32 %v1034, 2147483648
        %v1123 = vor.u32 1.1754944e-38, %v1122
        %v1124 = vsel %vm1121, %v1123, %v1119
        %v1125 = vrcp.pop %v1037
        %v1126 = vmul.f32 %v1037, %v1125
        %v1127 = vsub.f32 1.0, %v1126
        %v1128 = vmul.f32 %v1125, %v1127
        %v1129 = vadd.f32 %v1125, %v1128
        %vm1130 = vweird.f32 %v1037
        %vm1131 = vweird.f32 %v1125
        %vm1132 = vmor %vm1130, %vm1131
        %v1133 = vsel %vm1132, %v1125, %v1129
        %v1134 = vand.u32 2147483647, %v1037
        %vm1135 = vcmp.eq.f32.partialorder %v1134, 8.507059e+37
        %v1136 = vand.u32 %v1037, 2147483648
        %v1137 = vor.u32 1.1754944e-38, %v1136
        %v1138 = vsel %vm1135, %v1137, %v1133
        %v1139 = vrcp.pop %v1040
        %v1140 = vmul.f32 %v1040, %v1139
        %v1141 = vsub.f32 1.0, %v1140
        %v1142 = vmul.f32 %v1139, %v1141
        %v1143 = vadd.f32 %v1139, %v1142
        %vm1144 = vweird.f32 %v1040
        %vm1145 = vweird.f32 %v1139
        %vm1146 = vmor %vm1144, %vm1145
        %v1147 = vsel %vm1146, %v1139, %v1143
        %v1148 = vand.u32 2147483647, %v1040
        %vm1149 = vcmp.eq.f32.partialorder %v1148, 8.507059e+37
        %v1150 = vand.u32 %v1040, 2147483648
        %v1151 = vor.u32 1.1754944e-38, %v1150
        %v1152 = vsel %vm1149, %v1151, %v1147
        %v1153 = vmul.f32 %v1002, %v1054
        %v1154 = vmul.f32 %v1004, %v1068
        %v1155 = vmul.f32 %v1006, %v1082
        %v1156 = vmul.f32 %v1008, %v1096
        %v1157 = vmul.f32 %v1010, %v1110
        %v1158 = vmul.f32 %v1012, %v1124
        %v1159 = vmul.f32 %v1014, %v1138
        %v1160 = vmul.f32 %v1016, %v1152
        %s1161 = scalar_lea.vmem %s297, 64 [#allocation7]
        %1162 = vst.msk [vmem:[%s1161] sm:$0xff] %vm621, %v1153
        %1163 = vst.msk [vmem:[%s1161 + $0x8] sm:$0xff] %vm621, %v1154
        %1164 = vst.msk [vmem:[%s1161 + $0x10] sm:$0xff] %vm621, %v1155
        %1165 = vst.msk [vmem:[%s1161 + $0x18] sm:$0xff] %vm621, %v1156
        %1166 = vst.msk [vmem:[%s1161 + $0x20] sm:$0xff] %vm621, %v1157
        %1167 = vst.msk [vmem:[%s1161 + $0x28] sm:$0xff] %vm621, %v1158
        %1168 = vst.msk [vmem:[%s1161 + $0x30] sm:$0xff] %vm621, %v1159
        %1169 = vst.msk [vmem:[%s1161 + $0x38] sm:$0xff] %vm621, %v1160
        %v1170 = vld [vmem:[#allocation2] sm:$0xff]
        %v1171 = vld [vmem:[#allocation2 + $0x8] sm:$0xff]
        %v1172 = vld [vmem:[#allocation2 + $0x10] sm:$0xff]
        %v1173 = vld [vmem:[#allocation2 + $0x18] sm:$0xff]
        %v1174 = vld [vmem:[#allocation2 + $0x20] sm:$0xff]
        %v1175 = vld [vmem:[#allocation2 + $0x28] sm:$0xff]
        %v1176 = vld [vmem:[#allocation2 + $0x30] sm:$0xff]
        %v1177 = vld [vmem:[#allocation2 + $0x38] sm:$0xff]
        %1186 = vrot.lane.b32.xlu0 %v1170, 96
        %v1187 = vpop.permute.xlu0 %1186
        %1188 = vrot.lane.b32.xlu0 %v1171, 96
        %v1189 = vpop.permute.xlu0 %1188
        %1190 = vrot.lane.b32.xlu0 %v1172, 96
        %v1191 = vpop.permute.xlu0 %1190
        %1192 = vrot.lane.b32.xlu0 %v1173, 96
        %v1193 = vpop.permute.xlu0 %1192
        %1194 = vrot.lane.b32.xlu0 %v1174, 96
        %v1195 = vpop.permute.xlu0 %1194
        %1196 = vrot.lane.b32.xlu0 %v1175, 96
        %v1197 = vpop.permute.xlu0 %1196
        %1198 = vrot.lane.b32.xlu0 %v1176, 96
        %v1199 = vpop.permute.xlu0 %1198
        %1200 = vrot.lane.b32.xlu0 %v1177, 96
        %v1201 = vpop.permute.xlu0 %1200
        %v1211 = vsel %vm621, %v1153, 0
        %v1214 = vsel %vm621, %v1154, 0
        %v1217 = vsel %vm621, %v1155, 0
        %v1220 = vsel %vm621, %v1156, 0
        %v1223 = vsel %vm621, %v1157, 0
        %v1226 = vsel %vm621, %v1158, 0
        %v1229 = vsel %vm621, %v1159, 0
        %v1232 = vsel %vm621, %v1160, 0
        %1234 = vmatpush.msra.mxu0 0.0
        %1235 = vmatpush.msra.mxu0 0.0
        %1236 = vmatpush.msra.mxu0 0.0
        %1237 = vmatpush.msra.mxu0 0.0
        %1238 = vmatpush.msra.mxu0 0.0
        %1239 = vmatpush.msra.mxu0 0.0
        %1240 = vmatpush.msra.mxu0 0.0
        %1241 = vmatpush.msra.mxu0 0.0
        %1242 = vmatpush.msra.mxu0 %v1201
        %1243 = vmatpush.msra.mxu0 %v1199
        %1244 = vmatpush.msra.mxu0 %v1197
        %1245 = vmatpush.msra.mxu0 %v1195
        %1246 = vmatpush.msra.mxu0 %v1193
        %1247 = vmatpush.msra.mxu0 %v1191
        %1248 = vmatpush.msra.mxu0 %v1189
        %1249 = vmatpush.msra.mxu0 %v1187
        %1250 = vmatmul.f32.gmra.mxu0 %v1211
        %v1251 = vpop.f32.mrf.mxu0
        %v1252 = vadd.f32 0.0, %v1251
        %1253 = vmatmul.f32.gmra.mxu0 %v1214
        %v1254 = vpop.f32.mrf.mxu0
        %v1255 = vadd.f32 0.0, %v1254
        %1256 = vmatmul.f32.gmra.mxu0 %v1217
        %v1257 = vpop.f32.mrf.mxu0
        %v1258 = vadd.f32 0.0, %v1257
        %1259 = vmatmul.f32.gmra.mxu0 %v1220
        %v1260 = vpop.f32.mrf.mxu0
        %v1261 = vadd.f32 0.0, %v1260
        %1262 = vmatmul.f32.gmra.mxu0 %v1223
        %v1263 = vpop.f32.mrf.mxu0
        %v1264 = vadd.f32 0.0, %v1263
        %1265 = vmatmul.f32.gmra.mxu0 %v1226
        %v1266 = vpop.f32.mrf.mxu0
        %v1267 = vadd.f32 0.0, %v1266
        %1268 = vmatmul.f32.gmra.mxu0 %v1229
        %v1269 = vpop.f32.mrf.mxu0
        %v1270 = vadd.f32 0.0, %v1269
        %1271 = vmatmul.f32.gmra.mxu0 %v1232
        %v1272 = vpop.f32.mrf.mxu0
        %v1273 = vadd.f32 0.0, %v1272
        %1274 = vdwg.mxu0
        %v1275 = vld [vmem:[#allocation4 + $0x2] sm:$0x1]
        %1276 = vset.pattern.permute.xlu0 2
        %1277 = vperm.xlu0 %1276, %v531
        %v1278 = vpop.permute.xlu0 %1277
        %1280 = vset.pattern.permute.xlu0 2
        %1281 = vperm.xlu0 %1280, %v532
        %v1282 = vpop.permute.xlu0 %1281
        %1284 = vset.pattern.permute.xlu0 2
        %1285 = vperm.xlu0 %1284, %v533
        %v1286 = vpop.permute.xlu0 %1285
        %1288 = vset.pattern.permute.xlu0 2
        %1289 = vperm.xlu0 %1288, %v534
        %v1290 = vpop.permute.xlu0 %1289
        %1292 = vset.pattern.permute.xlu0 2
        %1293 = vperm.xlu0 %1292, %v535
        %v1294 = vpop.permute.xlu0 %1293
        %1296 = vset.pattern.permute.xlu0 2
        %1297 = vperm.xlu0 %1296, %v536
        %v1298 = vpop.permute.xlu0 %1297
        %1300 = vset.pattern.permute.xlu0 2
        %1301 = vperm.xlu0 %1300, %v537
        %v1302 = vpop.permute.xlu0 %1301
        %1304 = vset.pattern.permute.xlu0 2
        %1305 = vperm.xlu0 %1304, %v538
        %v1306 = vpop.permute.xlu0 %1305
        %v1308 = vperm.slane %v1275, 0
        %v1309 = vadd.f32 %v1278, %v1308
        %v1310 = vadd.f32 %v1282, %v1308
        %v1311 = vadd.f32 %v1286, %v1308
        %v1312 = vadd.f32 %v1290, %v1308
        %v1313 = vadd.f32 %v1294, %v1308
        %v1314 = vadd.f32 %v1298, %v1308
        %v1315 = vadd.f32 %v1302, %v1308
        %v1316 = vadd.f32 %v1306, %v1308
        %vm1317 = vcmp.ge.f32.partialorder %v1309, 0.0
        %vm1318 = vcmp.ge.f32.partialorder %v1310, 0.0
        %vm1319 = vcmp.ge.f32.partialorder %v1311, 0.0
        %vm1320 = vcmp.ge.f32.partialorder %v1312, 0.0
        %vm1321 = vcmp.ge.f32.partialorder %v1313, 0.0
        %vm1322 = vcmp.ge.f32.partialorder %v1314, 0.0
        %vm1323 = vcmp.ge.f32.partialorder %v1315, 0.0
        %vm1324 = vcmp.ge.f32.partialorder %v1316, 0.0
        %v1325 = vmul.f32 %v1309, 0.2
        %v1326 = vmul.f32 %v1310, 0.2
        %v1327 = vmul.f32 %v1311, 0.2
        %v1328 = vmul.f32 %v1312, 0.2
        %v1329 = vmul.f32 %v1313, 0.2
        %v1330 = vmul.f32 %v1314, 0.2
        %v1331 = vmul.f32 %v1315, 0.2
        %v1332 = vmul.f32 %v1316, 0.2
        %v1333 = vsel %vm1317, %v1309, %v1325
        %v1334 = vsel %vm1318, %v1310, %v1326
        %v1335 = vsel %vm1319, %v1311, %v1327
        %v1336 = vsel %vm1320, %v1312, %v1328
        %v1337 = vsel %vm1321, %v1313, %v1329
        %v1338 = vsel %vm1322, %v1314, %v1330
        %v1339 = vsel %vm1323, %v1315, %v1331
        %v1340 = vsel %vm1324, %v1316, %v1332
        %v1341 = vmul.f32 %v521, %v1333
        %v1342 = vmul.f32 %v522, %v1334
        %v1343 = vmul.f32 %v523, %v1335
        %v1344 = vmul.f32 %v524, %v1336
        %v1345 = vmul.f32 %v525, %v1337
        %v1346 = vmul.f32 %v526, %v1338
        %v1347 = vmul.f32 %v527, %v1339
        %v1348 = vmul.f32 %v528, %v1340
        %v1349 = vsel %vm621, %v1341, -inf
        %1350 = vmax.xlane.f32.xlu0 %v1349
        %v1351 = vpop.xlane.xlu0 %1350
        %v1352 = vsel %vm621, %v1342, -inf
        %1353 = vmax.xlane.f32.xlu0 %v1352
        %v1354 = vpop.xlane.xlu0 %1353
        %v1355 = vsel %vm621, %v1343, -inf
        %1356 = vmax.xlane.f32.xlu0 %v1355
        %v1357 = vpop.xlane.xlu0 %1356
        %v1358 = vsel %vm621, %v1344, -inf
        %1359 = vmax.xlane.f32.xlu0 %v1358
        %v1360 = vpop.xlane.xlu0 %1359
        %v1361 = vsel %vm621, %v1345, -inf
        %1362 = vmax.xlane.f32.xlu0 %v1361
        %v1363 = vpop.xlane.xlu0 %1362
        %v1364 = vsel %vm621, %v1346, -inf
        %1365 = vmax.xlane.f32.xlu0 %v1364
        %v1366 = vpop.xlane.xlu0 %1365
        %v1367 = vsel %vm621, %v1347, -inf
        %1368 = vmax.xlane.f32.xlu0 %v1367
        %v1369 = vpop.xlane.xlu0 %1368
        %v1370 = vsel %vm621, %v1348, -inf
        %1371 = vmax.xlane.f32.xlu0 %v1370
        %v1372 = vpop.xlane.xlu0 %1371
        %v1373 = vsub.f32 %v1341, %v1351
        %v1374 = vsub.f32 %v1342, %v1354
        %v1375 = vsub.f32 %v1343, %v1357
        %v1376 = vsub.f32 %v1344, %v1360
        %v1377 = vsub.f32 %v1345, %v1363
        %v1378 = vsub.f32 %v1346, %v1366
        %v1379 = vsub.f32 %v1347, %v1369
        %v1380 = vsub.f32 %v1348, %v1372
        %v1381 = vmul.f32 %v1373, 1.442695
        %v1382 = vpow.pop %v1381
        %v1383 = vmul.f32 %v1374, 1.442695
        %v1384 = vpow.pop %v1383
        %v1385 = vmul.f32 %v1375, 1.442695
        %v1386 = vpow.pop %v1385
        %v1387 = vmul.f32 %v1376, 1.442695
        %v1388 = vpow.pop %v1387
        %v1389 = vmul.f32 %v1377, 1.442695
        %v1390 = vpow.pop %v1389
        %v1391 = vmul.f32 %v1378, 1.442695
        %v1392 = vpow.pop %v1391
        %v1393 = vmul.f32 %v1379, 1.442695
        %v1394 = vpow.pop %v1393
        %v1395 = vmul.f32 %v1380, 1.442695
        %v1396 = vpow.pop %v1395
        %v1397 = vsel %vm621, %v1382, 0.0
        %1398 = vadd.xlane.f32.xlu0 %v1397
        %v1399 = vpop.xlane.xlu0 %1398
        %v1400 = vsel %vm621, %v1384, 0.0
        %1401 = vadd.xlane.f32.xlu0 %v1400
        %v1402 = vpop.xlane.xlu0 %1401
        %v1403 = vsel %vm621, %v1386, 0.0
        %1404 = vadd.xlane.f32.xlu0 %v1403
        %v1405 = vpop.xlane.xlu0 %1404
        %v1406 = vsel %vm621, %v1388, 0.0
        %1407 = vadd.xlane.f32.xlu0 %v1406
        %v1408 = vpop.xlane.xlu0 %1407
        %v1409 = vsel %vm621, %v1390, 0.0
        %1410 = vadd.xlane.f32.xlu0 %v1409
        %v1411 = vpop.xlane.xlu0 %1410
        %v1412 = vsel %vm621, %v1392, 0.0
        %1413 = vadd.xlane.f32.xlu0 %v1412
        %v1414 = vpop.xlane.xlu0 %1413
        %v1415 = vsel %vm621, %v1394, 0.0
        %1416 = vadd.xlane.f32.xlu0 %v1415
        %v1417 = vpop.xlane.xlu0 %1416
        %v1418 = vsel %vm621, %v1396, 0.0
        %1419 = vadd.xlane.f32.xlu0 %v1418
        %v1420 = vpop.xlane.xlu0 %1419
        %v1421 = vrcp.pop %v1399
        %v1422 = vmul.f32 %v1399, %v1421
        %v1423 = vsub.f32 1.0, %v1422
        %v1424 = vmul.f32 %v1421, %v1423
        %v1425 = vadd.f32 %v1421, %v1424
        %vm1426 = vweird.f32 %v1399
        %vm1427 = vweird.f32 %v1421
        %vm1428 = vmor %vm1426, %vm1427
        %v1429 = vsel %vm1428, %v1421, %v1425
        %v1430 = vand.u32 2147483647, %v1399
        %vm1431 = vcmp.eq.f32.partialorder %v1430, 8.507059e+37
        %v1432 = vand.u32 %v1399, 2147483648
        %v1433 = vor.u32 1.1754944e-38, %v1432
        %v1434 = vsel %vm1431, %v1433, %v1429
        %v1435 = vrcp.pop %v1402
        %v1436 = vmul.f32 %v1402, %v1435
        %v1437 = vsub.f32 1.0, %v1436
        %v1438 = vmul.f32 %v1435, %v1437
        %v1439 = vadd.f32 %v1435, %v1438
        %vm1440 = vweird.f32 %v1402
        %vm1441 = vweird.f32 %v1435
        %vm1442 = vmor %vm1440, %vm1441
        %v1443 = vsel %vm1442, %v1435, %v1439
        %v1444 = vand.u32 2147483647, %v1402
        %vm1445 = vcmp.eq.f32.partialorder %v1444, 8.507059e+37
        %v1446 = vand.u32 %v1402, 2147483648
        %v1447 = vor.u32 1.1754944e-38, %v1446
        %v1448 = vsel %vm1445, %v1447, %v1443
        %v1449 = vrcp.pop %v1405
        %v1450 = vmul.f32 %v1405, %v1449
        %v1451 = vsub.f32 1.0, %v1450
        %v1452 = vmul.f32 %v1449, %v1451
        %v1453 = vadd.f32 %v1449, %v1452
        %vm1454 = vweird.f32 %v1405
        %vm1455 = vweird.f32 %v1449
        %vm1456 = vmor %vm1454, %vm1455
        %v1457 = vsel %vm1456, %v1449, %v1453
        %v1458 = vand.u32 2147483647, %v1405
        %vm1459 = vcmp.eq.f32.partialorder %v1458, 8.507059e+37
        %v1460 = vand.u32 %v1405, 2147483648
        %v1461 = vor.u32 1.1754944e-38, %v1460
        %v1462 = vsel %vm1459, %v1461, %v1457
        %v1463 = vrcp.pop %v1408
        %v1464 = vmul.f32 %v1408, %v1463
        %v1465 = vsub.f32 1.0, %v1464
        %v1466 = vmul.f32 %v1463, %v1465
        %v1467 = vadd.f32 %v1463, %v1466
        %vm1468 = vweird.f32 %v1408
        %vm1469 = vweird.f32 %v1463
        %vm1470 = vmor %vm1468, %vm1469
        %v1471 = vsel %vm1470, %v1463, %v1467
        %v1472 = vand.u32 2147483647, %v1408
        %vm1473 = vcmp.eq.f32.partialorder %v1472, 8.507059e+37
        %v1474 = vand.u32 %v1408, 2147483648
        %v1475 = vor.u32 1.1754944e-38, %v1474
        %v1476 = vsel %vm1473, %v1475, %v1471
        %v1477 = vrcp.pop %v1411
        %v1478 = vmul.f32 %v1411, %v1477
        %v1479 = vsub.f32 1.0, %v1478
        %v1480 = vmul.f32 %v1477, %v1479
        %v1481 = vadd.f32 %v1477, %v1480
        %vm1482 = vweird.f32 %v1411
        %vm1483 = vweird.f32 %v1477
        %vm1484 = vmor %vm1482, %vm1483
        %v1485 = vsel %vm1484, %v1477, %v1481
        %v1486 = vand.u32 2147483647, %v1411
        %vm1487 = vcmp.eq.f32.partialorder %v1486, 8.507059e+37
        %v1488 = vand.u32 %v1411, 2147483648
        %v1489 = vor.u32 1.1754944e-38, %v1488
        %v1490 = vsel %vm1487, %v1489, %v1485
        %v1491 = vrcp.pop %v1414
        %v1492 = vmul.f32 %v1414, %v1491
        %v1493 = vsub.f32 1.0, %v1492
        %v1494 = vmul.f32 %v1491, %v1493
        %v1495 = vadd.f32 %v1491, %v1494
        %vm1496 = vweird.f32 %v1414
        %vm1497 = vweird.f32 %v1491
        %vm1498 = vmor %vm1496, %vm1497
        %v1499 = vsel %vm1498, %v1491, %v1495
        %v1500 = vand.u32 2147483647, %v1414
        %vm1501 = vcmp.eq.f32.partialorder %v1500, 8.507059e+37
        %v1502 = vand.u32 %v1414, 2147483648
        %v1503 = vor.u32 1.1754944e-38, %v1502
        %v1504 = vsel %vm1501, %v1503, %v1499
        %v1505 = vrcp.pop %v1417
        %v1506 = vmul.f32 %v1417, %v1505
        %v1507 = vsub.f32 1.0, %v1506
        %v1508 = vmul.f32 %v1505, %v1507
        %v1509 = vadd.f32 %v1505, %v1508
        %vm1510 = vweird.f32 %v1417
        %vm1511 = vweird.f32 %v1505
        %vm1512 = vmor %vm1510, %vm1511
        %v1513 = vsel %vm1512, %v1505, %v1509
        %v1514 = vand.u32 2147483647, %v1417
        %vm1515 = vcmp.eq.f32.partialorder %v1514, 8.507059e+37
        %v1516 = vand.u32 %v1417, 2147483648
        %v1517 = vor.u32 1.1754944e-38, %v1516
        %v1518 = vsel %vm1515, %v1517, %v1513
        %v1519 = vrcp.pop %v1420
        %v1520 = vmul.f32 %v1420, %v1519
        %v1521 = vsub.f32 1.0, %v1520
        %v1522 = vmul.f32 %v1519, %v1521
        %v1523 = vadd.f32 %v1519, %v1522
        %vm1524 = vweird.f32 %v1420
        %vm1525 = vweird.f32 %v1519
        %vm1526 = vmor %vm1524, %vm1525
        %v1527 = vsel %vm1526, %v1519, %v1523
        %v1528 = vand.u32 2147483647, %v1420
        %vm1529 = vcmp.eq.f32.partialorder %v1528, 8.507059e+37
        %v1530 = vand.u32 %v1420, 2147483648
        %v1531 = vor.u32 1.1754944e-38, %v1530
        %v1532 = vsel %vm1529, %v1531, %v1527
        %v1533 = vmul.f32 %v1382, %v1434
        %v1534 = vmul.f32 %v1384, %v1448
        %v1535 = vmul.f32 %v1386, %v1462
        %v1536 = vmul.f32 %v1388, %v1476
        %v1537 = vmul.f32 %v1390, %v1490
        %v1538 = vmul.f32 %v1392, %v1504
        %v1539 = vmul.f32 %v1394, %v1518
        %v1540 = vmul.f32 %v1396, %v1532
        %s1541 = scalar_lea.vmem %s297, 128 [#allocation7]
        %1542 = vst.msk [vmem:[%s1541] sm:$0xff] %vm621, %v1533
        %1543 = vst.msk [vmem:[%s1541 + $0x8] sm:$0xff] %vm621, %v1534
        %1544 = vst.msk [vmem:[%s1541 + $0x10] sm:$0xff] %vm621, %v1535
        %1545 = vst.msk [vmem:[%s1541 + $0x18] sm:$0xff] %vm621, %v1536
        %1546 = vst.msk [vmem:[%s1541 + $0x20] sm:$0xff] %vm621, %v1537
        %1547 = vst.msk [vmem:[%s1541 + $0x28] sm:$0xff] %vm621, %v1538
        %1548 = vst.msk [vmem:[%s1541 + $0x30] sm:$0xff] %vm621, %v1539
        %1549 = vst.msk [vmem:[%s1541 + $0x38] sm:$0xff] %vm621, %v1540
        %v1550 = vld [vmem:[#allocation2] sm:$0xff]
        %v1551 = vld [vmem:[#allocation2 + $0x8] sm:$0xff]
        %v1552 = vld [vmem:[#allocation2 + $0x10] sm:$0xff]
        %v1553 = vld [vmem:[#allocation2 + $0x18] sm:$0xff]
        %v1554 = vld [vmem:[#allocation2 + $0x20] sm:$0xff]
        %v1555 = vld [vmem:[#allocation2 + $0x28] sm:$0xff]
        %v1556 = vld [vmem:[#allocation2 + $0x30] sm:$0xff]
        %v1557 = vld [vmem:[#allocation2 + $0x38] sm:$0xff]
        %1566 = vrot.lane.b32.xlu0 %v1550, 64
        %v1567 = vpop.permute.xlu0 %1566
        %1568 = vrot.lane.b32.xlu0 %v1551, 64
        %v1569 = vpop.permute.xlu0 %1568
        %1570 = vrot.lane.b32.xlu0 %v1552, 64
        %v1571 = vpop.permute.xlu0 %1570
        %1572 = vrot.lane.b32.xlu0 %v1553, 64
        %v1573 = vpop.permute.xlu0 %1572
        %1574 = vrot.lane.b32.xlu0 %v1554, 64
        %v1575 = vpop.permute.xlu0 %1574
        %1576 = vrot.lane.b32.xlu0 %v1555, 64
        %v1577 = vpop.permute.xlu0 %1576
        %1578 = vrot.lane.b32.xlu0 %v1556, 64
        %v1579 = vpop.permute.xlu0 %1578
        %1580 = vrot.lane.b32.xlu0 %v1557, 64
        %v1581 = vpop.permute.xlu0 %1580
        %v1591 = vsel %vm621, %v1533, 0
        %v1594 = vsel %vm621, %v1534, 0
        %v1597 = vsel %vm621, %v1535, 0
        %v1600 = vsel %vm621, %v1536, 0
        %v1603 = vsel %vm621, %v1537, 0
        %v1606 = vsel %vm621, %v1538, 0
        %v1609 = vsel %vm621, %v1539, 0
        %v1612 = vsel %vm621, %v1540, 0
        %1614 = vmatpush.msra.mxu0 0.0
        %1615 = vmatpush.msra.mxu0 0.0
        %1616 = vmatpush.msra.mxu0 0.0
        %1617 = vmatpush.msra.mxu0 0.0
        %1618 = vmatpush.msra.mxu0 0.0
        %1619 = vmatpush.msra.mxu0 0.0
        %1620 = vmatpush.msra.mxu0 0.0
        %1621 = vmatpush.msra.mxu0 0.0
        %1622 = vmatpush.msra.mxu0 %v1581
        %1623 = vmatpush.msra.mxu0 %v1579
        %1624 = vmatpush.msra.mxu0 %v1577
        %1625 = vmatpush.msra.mxu0 %v1575
        %1626 = vmatpush.msra.mxu0 %v1573
        %1627 = vmatpush.msra.mxu0 %v1571
        %1628 = vmatpush.msra.mxu0 %v1569
        %1629 = vmatpush.msra.mxu0 %v1567
        %1630 = vmatmul.f32.gmra.mxu0 %v1591
        %v1631 = vpop.f32.mrf.mxu0
        %v1632 = vadd.f32 0.0, %v1631
        %1633 = vmatmul.f32.gmra.mxu0 %v1594
        %v1634 = vpop.f32.mrf.mxu0
        %v1635 = vadd.f32 0.0, %v1634
        %1636 = vmatmul.f32.gmra.mxu0 %v1597
        %v1637 = vpop.f32.mrf.mxu0
        %v1638 = vadd.f32 0.0, %v1637
        %1639 = vmatmul.f32.gmra.mxu0 %v1600
        %v1640 = vpop.f32.mrf.mxu0
        %v1641 = vadd.f32 0.0, %v1640
        %1642 = vmatmul.f32.gmra.mxu0 %v1603
        %v1643 = vpop.f32.mrf.mxu0
        %v1644 = vadd.f32 0.0, %v1643
        %1645 = vmatmul.f32.gmra.mxu0 %v1606
        %v1646 = vpop.f32.mrf.mxu0
        %v1647 = vadd.f32 0.0, %v1646
        %1648 = vmatmul.f32.gmra.mxu0 %v1609
        %v1649 = vpop.f32.mrf.mxu0
        %v1650 = vadd.f32 0.0, %v1649
        %1651 = vmatmul.f32.gmra.mxu0 %v1612
        %v1652 = vpop.f32.mrf.mxu0
        %v1653 = vadd.f32 0.0, %v1652
        %1654 = vdwg.mxu0
        %v1655 = vld [vmem:[#allocation4 + $0x3] sm:$0x1]
        %1656 = vset.pattern.permute.xlu0 3
        %1657 = vperm.xlu0 %1656, %v531
        %v1658 = vpop.permute.xlu0 %1657
        %1660 = vset.pattern.permute.xlu0 3
        %1661 = vperm.xlu0 %1660, %v532
        %v1662 = vpop.permute.xlu0 %1661
        %1664 = vset.pattern.permute.xlu0 3
        %1665 = vperm.xlu0 %1664, %v533
        %v1666 = vpop.permute.xlu0 %1665
        %1668 = vset.pattern.permute.xlu0 3
        %1669 = vperm.xlu0 %1668, %v534
        %v1670 = vpop.permute.xlu0 %1669
        %1672 = vset.pattern.permute.xlu0 3
        %1673 = vperm.xlu0 %1672, %v535
        %v1674 = vpop.permute.xlu0 %1673
        %1676 = vset.pattern.permute.xlu0 3
        %1677 = vperm.xlu0 %1676, %v536
        %v1678 = vpop.permute.xlu0 %1677
        %1680 = vset.pattern.permute.xlu0 3
        %1681 = vperm.xlu0 %1680, %v537
        %v1682 = vpop.permute.xlu0 %1681
        %1684 = vset.pattern.permute.xlu0 3
        %1685 = vperm.xlu0 %1684, %v538
        %v1686 = vpop.permute.xlu0 %1685
        %v1688 = vperm.slane %v1655, 0
        %v1689 = vadd.f32 %v1658, %v1688
        %v1690 = vadd.f32 %v1662, %v1688
        %v1691 = vadd.f32 %v1666, %v1688
        %v1692 = vadd.f32 %v1670, %v1688
        %v1693 = vadd.f32 %v1674, %v1688
        %v1694 = vadd.f32 %v1678, %v1688
        %v1695 = vadd.f32 %v1682, %v1688
        %v1696 = vadd.f32 %v1686, %v1688
        %vm1697 = vcmp.ge.f32.partialorder %v1689, 0.0
        %vm1698 = vcmp.ge.f32.partialorder %v1690, 0.0
        %vm1699 = vcmp.ge.f32.partialorder %v1691, 0.0
        %vm1700 = vcmp.ge.f32.partialorder %v1692, 0.0
        %vm1701 = vcmp.ge.f32.partialorder %v1693, 0.0
        %vm1702 = vcmp.ge.f32.partialorder %v1694, 0.0
        %vm1703 = vcmp.ge.f32.partialorder %v1695, 0.0
        %vm1704 = vcmp.ge.f32.partialorder %v1696, 0.0
        %v1705 = vmul.f32 %v1689, 0.2
        %v1706 = vmul.f32 %v1690, 0.2
        %v1707 = vmul.f32 %v1691, 0.2
        %v1708 = vmul.f32 %v1692, 0.2
        %v1709 = vmul.f32 %v1693, 0.2
        %v1710 = vmul.f32 %v1694, 0.2
        %v1711 = vmul.f32 %v1695, 0.2
        %v1712 = vmul.f32 %v1696, 0.2
        %v1713 = vsel %vm1697, %v1689, %v1705
        %v1714 = vsel %vm1698, %v1690, %v1706
        %v1715 = vsel %vm1699, %v1691, %v1707
        %v1716 = vsel %vm1700, %v1692, %v1708
        %v1717 = vsel %vm1701, %v1693, %v1709
        %v1718 = vsel %vm1702, %v1694, %v1710
        %v1719 = vsel %vm1703, %v1695, %v1711
        %v1720 = vsel %vm1704, %v1696, %v1712
        %v1721 = vmul.f32 %v521, %v1713
        %v1722 = vmul.f32 %v522, %v1714
        %v1723 = vmul.f32 %v523, %v1715
        %v1724 = vmul.f32 %v524, %v1716
        %v1725 = vmul.f32 %v525, %v1717
        %v1726 = vmul.f32 %v526, %v1718
        %v1727 = vmul.f32 %v527, %v1719
        %v1728 = vmul.f32 %v528, %v1720
        %v1729 = vsel %vm621, %v1721, -inf
        %1730 = vmax.xlane.f32.xlu0 %v1729
        %v1731 = vpop.xlane.xlu0 %1730
        %v1732 = vsel %vm621, %v1722, -inf
        %1733 = vmax.xlane.f32.xlu0 %v1732
        %v1734 = vpop.xlane.xlu0 %1733
        %v1735 = vsel %vm621, %v1723, -inf
        %1736 = vmax.xlane.f32.xlu0 %v1735
        %v1737 = vpop.xlane.xlu0 %1736
        %v1738 = vsel %vm621, %v1724, -inf
        %1739 = vmax.xlane.f32.xlu0 %v1738
        %v1740 = vpop.xlane.xlu0 %1739
        %v1741 = vsel %vm621, %v1725, -inf
        %1742 = vmax.xlane.f32.xlu0 %v1741
        %v1743 = vpop.xlane.xlu0 %1742
        %v1744 = vsel %vm621, %v1726, -inf
        %1745 = vmax.xlane.f32.xlu0 %v1744
        %v1746 = vpop.xlane.xlu0 %1745
        %v1747 = vsel %vm621, %v1727, -inf
        %1748 = vmax.xlane.f32.xlu0 %v1747
        %v1749 = vpop.xlane.xlu0 %1748
        %v1750 = vsel %vm621, %v1728, -inf
        %1751 = vmax.xlane.f32.xlu0 %v1750
        %v1752 = vpop.xlane.xlu0 %1751
        %v1753 = vsub.f32 %v1721, %v1731
        %v1754 = vsub.f32 %v1722, %v1734
        %v1755 = vsub.f32 %v1723, %v1737
        %v1756 = vsub.f32 %v1724, %v1740
        %v1757 = vsub.f32 %v1725, %v1743
        %v1758 = vsub.f32 %v1726, %v1746
        %v1759 = vsub.f32 %v1727, %v1749
        %v1760 = vsub.f32 %v1728, %v1752
        %v1761 = vmul.f32 %v1753, 1.442695
        %v1762 = vpow.pop %v1761
        %v1763 = vmul.f32 %v1754, 1.442695
        %v1764 = vpow.pop %v1763
        %v1765 = vmul.f32 %v1755, 1.442695
        %v1766 = vpow.pop %v1765
        %v1767 = vmul.f32 %v1756, 1.442695
        %v1768 = vpow.pop %v1767
        %v1769 = vmul.f32 %v1757, 1.442695
        %v1770 = vpow.pop %v1769
        %v1771 = vmul.f32 %v1758, 1.442695
        %v1772 = vpow.pop %v1771
        %v1773 = vmul.f32 %v1759, 1.442695
        %v1774 = vpow.pop %v1773
        %v1775 = vmul.f32 %v1760, 1.442695
        %v1776 = vpow.pop %v1775
        %v1777 = vsel %vm621, %v1762, 0.0
        %1778 = vadd.xlane.f32.xlu0 %v1777
        %v1779 = vpop.xlane.xlu0 %1778
        %v1780 = vsel %vm621, %v1764, 0.0
        %1781 = vadd.xlane.f32.xlu0 %v1780
        %v1782 = vpop.xlane.xlu0 %1781
        %v1783 = vsel %vm621, %v1766, 0.0
        %1784 = vadd.xlane.f32.xlu0 %v1783
        %v1785 = vpop.xlane.xlu0 %1784
        %v1786 = vsel %vm621, %v1768, 0.0
        %1787 = vadd.xlane.f32.xlu0 %v1786
        %v1788 = vpop.xlane.xlu0 %1787
        %v1789 = vsel %vm621, %v1770, 0.0
        %1790 = vadd.xlane.f32.xlu0 %v1789
        %v1791 = vpop.xlane.xlu0 %1790
        %v1792 = vsel %vm621, %v1772, 0.0
        %1793 = vadd.xlane.f32.xlu0 %v1792
        %v1794 = vpop.xlane.xlu0 %1793
        %v1795 = vsel %vm621, %v1774, 0.0
        %1796 = vadd.xlane.f32.xlu0 %v1795
        %v1797 = vpop.xlane.xlu0 %1796
        %v1798 = vsel %vm621, %v1776, 0.0
        %1799 = vadd.xlane.f32.xlu0 %v1798
        %v1800 = vpop.xlane.xlu0 %1799
        %v1801 = vrcp.pop %v1779
        %v1802 = vmul.f32 %v1779, %v1801
        %v1803 = vsub.f32 1.0, %v1802
        %v1804 = vmul.f32 %v1801, %v1803
        %v1805 = vadd.f32 %v1801, %v1804
        %vm1806 = vweird.f32 %v1779
        %vm1807 = vweird.f32 %v1801
        %vm1808 = vmor %vm1806, %vm1807
        %v1809 = vsel %vm1808, %v1801, %v1805
        %v1810 = vand.u32 2147483647, %v1779
        %vm1811 = vcmp.eq.f32.partialorder %v1810, 8.507059e+37
        %v1812 = vand.u32 %v1779, 2147483648
        %v1813 = vor.u32 1.1754944e-38, %v1812
        %v1814 = vsel %vm1811, %v1813, %v1809
        %v1815 = vrcp.pop %v1782
        %v1816 = vmul.f32 %v1782, %v1815
        %v1817 = vsub.f32 1.0, %v1816
        %v1818 = vmul.f32 %v1815, %v1817
        %v1819 = vadd.f32 %v1815, %v1818
        %vm1820 = vweird.f32 %v1782
        %vm1821 = vweird.f32 %v1815
        %vm1822 = vmor %vm1820, %vm1821
        %v1823 = vsel %vm1822, %v1815, %v1819
        %v1824 = vand.u32 2147483647, %v1782
        %vm1825 = vcmp.eq.f32.partialorder %v1824, 8.507059e+37
        %v1826 = vand.u32 %v1782, 2147483648
        %v1827 = vor.u32 1.1754944e-38, %v1826
        %v1828 = vsel %vm1825, %v1827, %v1823
        %v1829 = vrcp.pop %v1785
        %v1830 = vmul.f32 %v1785, %v1829
        %v1831 = vsub.f32 1.0, %v1830
        %v1832 = vmul.f32 %v1829, %v1831
        %v1833 = vadd.f32 %v1829, %v1832
        %vm1834 = vweird.f32 %v1785
        %vm1835 = vweird.f32 %v1829
        %vm1836 = vmor %vm1834, %vm1835
        %v1837 = vsel %vm1836, %v1829, %v1833
        %v1838 = vand.u32 2147483647, %v1785
        %vm1839 = vcmp.eq.f32.partialorder %v1838, 8.507059e+37
        %v1840 = vand.u32 %v1785, 2147483648
        %v1841 = vor.u32 1.1754944e-38, %v1840
        %v1842 = vsel %vm1839, %v1841, %v1837
        %v1843 = vrcp.pop %v1788
        %v1844 = vmul.f32 %v1788, %v1843
        %v1845 = vsub.f32 1.0, %v1844
        %v1846 = vmul.f32 %v1843, %v1845
        %v1847 = vadd.f32 %v1843, %v1846
        %vm1848 = vweird.f32 %v1788
        %vm1849 = vweird.f32 %v1843
        %vm1850 = vmor %vm1848, %vm1849
        %v1851 = vsel %vm1850, %v1843, %v1847
        %v1852 = vand.u32 2147483647, %v1788
        %vm1853 = vcmp.eq.f32.partialorder %v1852, 8.507059e+37
        %v1854 = vand.u32 %v1788, 2147483648
        %v1855 = vor.u32 1.1754944e-38, %v1854
        %v1856 = vsel %vm1853, %v1855, %v1851
        %v1857 = vrcp.pop %v1791
        %v1858 = vmul.f32 %v1791, %v1857
        %v1859 = vsub.f32 1.0, %v1858
        %v1860 = vmul.f32 %v1857, %v1859
        %v1861 = vadd.f32 %v1857, %v1860
        %vm1862 = vweird.f32 %v1791
        %vm1863 = vweird.f32 %v1857
        %vm1864 = vmor %vm1862, %vm1863
        %v1865 = vsel %vm1864, %v1857, %v1861
        %v1866 = vand.u32 2147483647, %v1791
        %vm1867 = vcmp.eq.f32.partialorder %v1866, 8.507059e+37
        %v1868 = vand.u32 %v1791, 2147483648
        %v1869 = vor.u32 1.1754944e-38, %v1868
        %v1870 = vsel %vm1867, %v1869, %v1865
        %v1871 = vrcp.pop %v1794
        %v1872 = vmul.f32 %v1794, %v1871
        %v1873 = vsub.f32 1.0, %v1872
        %v1874 = vmul.f32 %v1871, %v1873
        %v1875 = vadd.f32 %v1871, %v1874
        %vm1876 = vweird.f32 %v1794
        %vm1877 = vweird.f32 %v1871
        %vm1878 = vmor %vm1876, %vm1877
        %v1879 = vsel %vm1878, %v1871, %v1875
        %v1880 = vand.u32 2147483647, %v1794
        %vm1881 = vcmp.eq.f32.partialorder %v1880, 8.507059e+37
        %v1882 = vand.u32 %v1794, 2147483648
        %v1883 = vor.u32 1.1754944e-38, %v1882
        %v1884 = vsel %vm1881, %v1883, %v1879
        %v1885 = vrcp.pop %v1797
        %v1886 = vmul.f32 %v1797, %v1885
        %v1887 = vsub.f32 1.0, %v1886
        %v1888 = vmul.f32 %v1885, %v1887
        %v1889 = vadd.f32 %v1885, %v1888
        %vm1890 = vweird.f32 %v1797
        %vm1891 = vweird.f32 %v1885
        %vm1892 = vmor %vm1890, %vm1891
        %v1893 = vsel %vm1892, %v1885, %v1889
        %v1894 = vand.u32 2147483647, %v1797
        %vm1895 = vcmp.eq.f32.partialorder %v1894, 8.507059e+37
        %v1896 = vand.u32 %v1797, 2147483648
        %v1897 = vor.u32 1.1754944e-38, %v1896
        %v1898 = vsel %vm1895, %v1897, %v1893
        %v1899 = vrcp.pop %v1800
        %v1900 = vmul.f32 %v1800, %v1899
        %v1901 = vsub.f32 1.0, %v1900
        %v1902 = vmul.f32 %v1899, %v1901
        %v1903 = vadd.f32 %v1899, %v1902
        %vm1904 = vweird.f32 %v1800
        %vm1905 = vweird.f32 %v1899
        %vm1906 = vmor %vm1904, %vm1905
        %v1907 = vsel %vm1906, %v1899, %v1903
        %v1908 = vand.u32 2147483647, %v1800
        %vm1909 = vcmp.eq.f32.partialorder %v1908, 8.507059e+37
        %v1910 = vand.u32 %v1800, 2147483648
        %v1911 = vor.u32 1.1754944e-38, %v1910
        %v1912 = vsel %vm1909, %v1911, %v1907
        %v1913 = vmul.f32 %v1762, %v1814
        %v1914 = vmul.f32 %v1764, %v1828
        %v1915 = vmul.f32 %v1766, %v1842
        %v1916 = vmul.f32 %v1768, %v1856
        %v1917 = vmul.f32 %v1770, %v1870
        %v1918 = vmul.f32 %v1772, %v1884
        %v1919 = vmul.f32 %v1774, %v1898
        %v1920 = vmul.f32 %v1776, %v1912
        %s1921 = scalar_lea.vmem %s297, 192 [#allocation7]
        %1922 = vst.msk [vmem:[%s1921] sm:$0xff] %vm621, %v1913
        %1923 = vst.msk [vmem:[%s1921 + $0x8] sm:$0xff] %vm621, %v1914
        %1924 = vst.msk [vmem:[%s1921 + $0x10] sm:$0xff] %vm621, %v1915
        %1925 = vst.msk [vmem:[%s1921 + $0x18] sm:$0xff] %vm621, %v1916
        %1926 = vst.msk [vmem:[%s1921 + $0x20] sm:$0xff] %vm621, %v1917
        %1927 = vst.msk [vmem:[%s1921 + $0x28] sm:$0xff] %vm621, %v1918
        %1928 = vst.msk [vmem:[%s1921 + $0x30] sm:$0xff] %vm621, %v1919
        %1929 = vst.msk [vmem:[%s1921 + $0x38] sm:$0xff] %vm621, %v1920
        %v1930 = vld [vmem:[#allocation2] sm:$0xff]
        %v1931 = vld [vmem:[#allocation2 + $0x8] sm:$0xff]
        %v1932 = vld [vmem:[#allocation2 + $0x10] sm:$0xff]
        %v1933 = vld [vmem:[#allocation2 + $0x18] sm:$0xff]
        %v1934 = vld [vmem:[#allocation2 + $0x20] sm:$0xff]
        %v1935 = vld [vmem:[#allocation2 + $0x28] sm:$0xff]
        %v1936 = vld [vmem:[#allocation2 + $0x30] sm:$0xff]
        %v1937 = vld [vmem:[#allocation2 + $0x38] sm:$0xff]
        %1946 = vrot.lane.b32.xlu0 %v1930, 32
        %v1947 = vpop.permute.xlu0 %1946
        %1948 = vrot.lane.b32.xlu0 %v1931, 32
        %v1949 = vpop.permute.xlu0 %1948
        %1950 = vrot.lane.b32.xlu0 %v1932, 32
        %v1951 = vpop.permute.xlu0 %1950
        %1952 = vrot.lane.b32.xlu0 %v1933, 32
        %v1953 = vpop.permute.xlu0 %1952
        %1954 = vrot.lane.b32.xlu0 %v1934, 32
        %v1955 = vpop.permute.xlu0 %1954
        %1956 = vrot.lane.b32.xlu0 %v1935, 32
        %v1957 = vpop.permute.xlu0 %1956
        %1958 = vrot.lane.b32.xlu0 %v1936, 32
        %v1959 = vpop.permute.xlu0 %1958
        %1960 = vrot.lane.b32.xlu0 %v1937, 32
        %v1961 = vpop.permute.xlu0 %1960
        %v1971 = vsel %vm621, %v1913, 0
        %v1974 = vsel %vm621, %v1914, 0
        %v1977 = vsel %vm621, %v1915, 0
        %v1980 = vsel %vm621, %v1916, 0
        %v1983 = vsel %vm621, %v1917, 0
        %v1986 = vsel %vm621, %v1918, 0
        %v1989 = vsel %vm621, %v1919, 0
        %v1992 = vsel %vm621, %v1920, 0
        %1994 = vmatpush.msra.mxu0 0.0
        %1995 = vmatpush.msra.mxu0 0.0
        %1996 = vmatpush.msra.mxu0 0.0
        %1997 = vmatpush.msra.mxu0 0.0
        %1998 = vmatpush.msra.mxu0 0.0
        %1999 = vmatpush.msra.mxu0 0.0
        %2000 = vmatpush.msra.mxu0 0.0
        %2001 = vmatpush.msra.mxu0 0.0
        %2002 = vmatpush.msra.mxu0 %v1961
        %2003 = vmatpush.msra.mxu0 %v1959
        %2004 = vmatpush.msra.mxu0 %v1957
        %2005 = vmatpush.msra.mxu0 %v1955
        %2006 = vmatpush.msra.mxu0 %v1953
        %2007 = vmatpush.msra.mxu0 %v1951
        %2008 = vmatpush.msra.mxu0 %v1949
        %2009 = vmatpush.msra.mxu0 %v1947
        %2010 = vmatmul.f32.gmra.mxu0 %v1971
        %v2011 = vpop.f32.mrf.mxu0
        %v2012 = vadd.f32 0.0, %v2011
        %2013 = vmatmul.f32.gmra.mxu0 %v1974
        %v2014 = vpop.f32.mrf.mxu0
        %v2015 = vadd.f32 0.0, %v2014
        %2016 = vmatmul.f32.gmra.mxu0 %v1977
        %v2017 = vpop.f32.mrf.mxu0
        %v2018 = vadd.f32 0.0, %v2017
        %2019 = vmatmul.f32.gmra.mxu0 %v1980
        %v2020 = vpop.f32.mrf.mxu0
        %v2021 = vadd.f32 0.0, %v2020
        %2022 = vmatmul.f32.gmra.mxu0 %v1983
        %v2023 = vpop.f32.mrf.mxu0
        %v2024 = vadd.f32 0.0, %v2023
        %2025 = vmatmul.f32.gmra.mxu0 %v1986
        %v2026 = vpop.f32.mrf.mxu0
        %v2027 = vadd.f32 0.0, %v2026
        %2028 = vmatmul.f32.gmra.mxu0 %v1989
        %v2029 = vpop.f32.mrf.mxu0
        %v2030 = vadd.f32 0.0, %v2029
        %2031 = vmatmul.f32.gmra.mxu0 %v1992
        %v2032 = vpop.f32.mrf.mxu0
        %v2033 = vadd.f32 0.0, %v2032
        %2034 = vdwg.mxu0
        %2043 = vrot.lane.b32.xlu0 %v1252, 32
        %v2044 = vpop.permute.xlu0 %2043
        %2045 = vrot.lane.b32.xlu0 %v1255, 32
        %v2046 = vpop.permute.xlu0 %2045
        %2047 = vrot.lane.b32.xlu0 %v1258, 32
        %v2048 = vpop.permute.xlu0 %2047
        %2049 = vrot.lane.b32.xlu0 %v1261, 32
        %v2050 = vpop.permute.xlu0 %2049
        %2051 = vrot.lane.b32.xlu0 %v1264, 32
        %v2052 = vpop.permute.xlu0 %2051
        %2053 = vrot.lane.b32.xlu0 %v1267, 32
        %v2054 = vpop.permute.xlu0 %2053
        %2055 = vrot.lane.b32.xlu0 %v1270, 32
        %v2056 = vpop.permute.xlu0 %2055
        %2057 = vrot.lane.b32.xlu0 %v1273, 32
        %v2058 = vpop.permute.xlu0 %2057
        %2075 = vrot.lane.b32.xlu0 %v1632, 64
        %v2076 = vpop.permute.xlu0 %2075
        %2077 = vrot.lane.b32.xlu0 %v1635, 64
        %v2078 = vpop.permute.xlu0 %2077
        %2079 = vrot.lane.b32.xlu0 %v1638, 64
        %v2080 = vpop.permute.xlu0 %2079
        %2081 = vrot.lane.b32.xlu0 %v1641, 64
        %v2082 = vpop.permute.xlu0 %2081
        %2083 = vrot.lane.b32.xlu0 %v1644, 64
        %v2084 = vpop.permute.xlu0 %2083
        %2085 = vrot.lane.b32.xlu0 %v1647, 64
        %v2086 = vpop.permute.xlu0 %2085
        %2087 = vrot.lane.b32.xlu0 %v1650, 64
        %v2088 = vpop.permute.xlu0 %2087
        %2089 = vrot.lane.b32.xlu0 %v1653, 64
        %v2090 = vpop.permute.xlu0 %2089
        %2107 = vrot.lane.b32.xlu0 %v2012, 96
        %v2108 = vpop.permute.xlu0 %2107
        %2109 = vrot.lane.b32.xlu0 %v2015, 96
        %v2110 = vpop.permute.xlu0 %2109
        %2111 = vrot.lane.b32.xlu0 %v2018, 96
        %v2112 = vpop.permute.xlu0 %2111
        %2113 = vrot.lane.b32.xlu0 %v2021, 96
        %v2114 = vpop.permute.xlu0 %2113
        %2115 = vrot.lane.b32.xlu0 %v2024, 96
        %v2116 = vpop.permute.xlu0 %2115
        %2117 = vrot.lane.b32.xlu0 %v2027, 96
        %v2118 = vpop.permute.xlu0 %2117
        %2119 = vrot.lane.b32.xlu0 %v2030, 96
        %v2120 = vpop.permute.xlu0 %2119
        %2121 = vrot.lane.b32.xlu0 %v2033, 96
        %v2122 = vpop.permute.xlu0 %2121
        %vm2131 = vcmask 261120
        %v2132 = vsel %vm2131, %v872, %v2044
        %v2133 = vsel %vm2131, %v875, %v2046
        %v2134 = vsel %vm2131, %v878, %v2048
        %v2135 = vsel %vm2131, %v881, %v2050
        %v2136 = vsel %vm2131, %v884, %v2052
        %v2137 = vsel %vm2131, %v887, %v2054
        %v2138 = vsel %vm2131, %v890, %v2056
        %v2139 = vsel %vm2131, %v893, %v2058
        %v2140 = vsel %vm621, %v2132, %v2076
        %v2141 = vsel %vm621, %v2133, %v2078
        %v2142 = vsel %vm621, %v2134, %v2080
        %v2143 = vsel %vm621, %v2135, %v2082
        %v2144 = vsel %vm621, %v2136, %v2084
        %v2145 = vsel %vm621, %v2137, %v2086
        %v2146 = vsel %vm621, %v2138, %v2088
        %v2147 = vsel %vm621, %v2139, %v2090
        %vm2148 = vcmask 785408
        %v2149 = vsel %vm2148, %v2140, %v2108
        %v2150 = vsel %vm2148, %v2141, %v2110
        %v2151 = vsel %vm2148, %v2142, %v2112
        %v2152 = vsel %vm2148, %v2143, %v2114
        %v2153 = vsel %vm2148, %v2144, %v2116
        %v2154 = vsel %vm2148, %v2145, %v2118
        %v2155 = vsel %vm2148, %v2146, %v2120
        %v2156 = vsel %vm2148, %v2147, %v2122
        %v2157 = vld [vmem:[%s4] sm:$0x1]
        %v2159 = vperm.slane %v2157, 0
        %v2161 = vadd.f32 %v2149, %v2159
        %v2162 = vadd.f32 %v2150, %v2159
        %v2163 = vadd.f32 %v2151, %v2159
        %v2164 = vadd.f32 %v2152, %v2159
        %v2165 = vadd.f32 %v2153, %v2159
        %v2166 = vadd.f32 %v2154, %v2159
        %v2167 = vadd.f32 %v2155, %v2159
        %v2168 = vadd.f32 %v2156, %v2159
        %2169 = vst [vmem:[%s290] sm:$0xff] %v2161
        %2170 = vst [vmem:[%s290 + $0x8] sm:$0xff] %v2162
        %2171 = vst [vmem:[%s290 + $0x10] sm:$0xff] %v2163
        %2172 = vst [vmem:[%s290 + $0x18] sm:$0xff] %v2164
        %2173 = vst [vmem:[%s290 + $0x20] sm:$0xff] %v2165
        %2174 = vst [vmem:[%s290 + $0x28] sm:$0xff] %v2166
        %2175 = vst [vmem:[%s290 + $0x30] sm:$0xff] %v2167
        %2176 = vst [vmem:[%s290 + $0x38] sm:$0xff] %v2168
        %s2177 = sand.u32 %s163, 1
        %s2178 = scalar_lea.sflag [#allocation6], %s2177
        %s2179 = sand.u32 %s163, 1
        %s2180 = smul.addr %s2179, 64
        %s2181 = scalar_lea.vmem [#allocation5], %s2180
        %s2182 = sand.u32 %s191, 1
        %s2183 = scalar_lea.sflag [#allocation8], %s2182
        %s2184 = sand.u32 %s191, 1
        %s2185 = smul.addr %s2184, 256
        %s2186 = scalar_lea.vmem [#allocation7], %s2185
        // Predicated region
        $region45: #{tpu_custom_call.1} parent=39 // pred_check
          %p2187 = pneg %p173
        $region46: #{tpu_custom_call.1} parent=39 // pred_check_branch
          %2189 = sbr.rel (%p2187) target = $region48
        $region47: #{tpu_custom_call.1} parent=39 // pred_region
          %s2190 = smul.u32 8, %s29
          %2192 = vsyncadd %s2178, 0
          %s2193 = smul.addr %s28, 8
          %s2194 = sadd.s32 %s2190, %s2193
          %s2195 = smul.addr %s2194, 8
          %s2196 = scalar_lea.hbm %s5, %s2195
          %s2197 = sshll.u32 %s2181, 4
          %s2198 = int_to_ptr.vmem [resolvable:$true] %s2197
          %s2199 = sshll.u32 %s2196, 4
          %s2200 = int_to_ptr.hbm [resolvable:$true] %s2199
          %2205 = dma.vmem_to_hbm [thread:$0]  %s2198, 1024, %s2200, %s2178, 128, 128, 8
        $region48: #{tpu_custom_call.1} parent=39 // pred_fallthru
          _
        // Predicated region
        $region49: #{tpu_custom_call.1} parent=39 // pred_check
          %p2206 = pneg %p201
        $region50: #{tpu_custom_call.1} parent=39 // pred_check_branch
          %2208 = sbr.rel (%p2206) target = $region52
        $region51: #{tpu_custom_call.1} parent=39 // pred_region
          %s2209 = smul.u32 8, %s29
          %2211 = vsyncadd %s2183, 0
          %s2212 = smul.addr %s28, 32
          %s2213 = sadd.s32 %s2209, %s2212
          %s2214 = smul.addr %s2213, 8
          %s2215 = scalar_lea.hbm %s6, %s2214
          %s2216 = sshll.u32 %s2186, 4
          %s2217 = int_to_ptr.vmem [resolvable:$true] %s2216
          %s2218 = sshll.u32 %s2215, 4
          %s2219 = int_to_ptr.hbm [resolvable:$true] %s2218
          %2224 = dma.vmem_to_hbm [thread:$0]  %s2217, 4096, %s2219, %s2183, 128, 128, 8
        $region52: #{tpu_custom_call.1} parent=39 // pred_fallthru
          _
      $region40: #{tpu_custom_call.1} parent=5 // pred_fallthru
        _
      %p2225 = scmp.le.s32.totalorder 2, %s19
      // Predicated region
      $region53: #{tpu_custom_call.1} parent=5 // pred_check
        %p2226 = pneg %p2225
      $region54: #{tpu_custom_call.1} parent=5 // pred_check_branch
        %2228 = sbr.rel (%p2226) target = $region56
      $region55: #{tpu_custom_call.1} parent=5 // pred_region
        %s2229 = ssub.s32 %s19, 2
        // Predicated region
        $region57: #{tpu_custom_call.1} parent=55 // pred_check
          %p2230 = pneg %p179
        $region58: #{tpu_custom_call.1} parent=55 // pred_check_branch
          %2232 = sbr.rel (%p2230) target = $region60
        $region59: #{tpu_custom_call.1} parent=55 // pred_region
          %s2233 = sand.u32 %s164, 1
          %s2234 = scalar_lea.sflag [#allocation6], %s2233
          %s2235 = sand.u32 %s164, 1
          %s2236 = smul.addr %s2235, 64
          %s2237 = scalar_lea.vmem [#allocation5], %s2236
          %2239 = dma.done %s2234, 1024
        $region60: #{tpu_custom_call.1} parent=55 // pred_fallthru
          _
        // Predicated region
        $region61: #{tpu_custom_call.1} parent=55 // pred_check
          %p2240 = pneg %p207
        $region62: #{tpu_custom_call.1} parent=55 // pred_check_branch
          %2242 = sbr.rel (%p2240) target = $region64
        $region63: #{tpu_custom_call.1} parent=55 // pred_region
          %s2243 = sand.u32 %s192, 1
          %s2244 = scalar_lea.sflag [#allocation8], %s2243
          %s2245 = sand.u32 %s192, 1
          %s2246 = smul.addr %s2245, 256
          %s2247 = scalar_lea.vmem [#allocation7], %s2246
          %2249 = dma.done %s2244, 4096
        $region64: #{tpu_custom_call.1} parent=55 // pred_fallthru
          _
      $region56: #{tpu_custom_call.1} parent=5 // pred_fallthru
        _
    $region6: #{tpu_custom_call.1} parent=1 // loop_footer
      %s23 = sadd.s32 1, %s19
    $region7: #{tpu_custom_call.1} parent=1 // loop_footer_branch
      %18 = sbr.rel target = $region3
    $region8: #{tpu_custom_call.1} parent=1 // loop_exit
      _
    %2250 = vsyncpa [#allocation6], 1
    %s2251 = scalar_lea.sflag [#allocation6], 1
    %2252 = vsyncpa %s2251, 1
    %2253 = vsyncpa [#allocation8], 1
    %s2254 = scalar_lea.sflag [#allocation8], 1
    %2255 = vsyncpa %s2254, 1

</llo_original>
